<compile_context>
chip_gen: v5e
topology: v5e:2x2
jax: 0.10.0
libtpu: 0.0.40
codegen_flags: <defaults>
</compile_context>

<pallas_src>
import functools

import jax
import jax.numpy as jnp
from jax.experimental import pallas as pl
from jax.experimental.pallas import tpu as pltpu


def _conv2d_kernel(x_ref, w_ref, b_ref, o_ref, *, kh, kw, stride, out_h, out_w):
    # x_ref : (Bt, H_pad, W_pad, C_in)   NHWC, zero-padded in the wrapper
    # w_ref : (kH*kW*C_in, Cot)          im2col weight slab, Cot = 128/256 tile
    # b_ref : (1, Cot)
    # o_ref : (Bt, OH*OW, Cot)           lane-dense output slab
    bt, _, _, c_in = x_ref.shape
    cot = o_ref.shape[-1]
    s = stride

    # Gather the kH*kW taps with (strided) loads straight from the ref and
    # stack them on the lane axis -> (Bt, OH, OW, kH*kW*C_in).  Strides only
    # touch the major (H) / sublane (W) axes, never lanes.
    taps = []
    for i in range(kh):
        for j in range(kw):
            if s == 1:
                win = x_ref[:, pl.ds(i, out_h), pl.ds(j, out_w), :]
            else:
                win = x_ref[:, pl.ds(i, out_h, stride=s),
                            pl.ds(j, out_w, stride=s), :]
            taps.append(win)
    patches = jnp.concatenate(taps, axis=-1)
    patches = patches.reshape(bt * out_h * out_w, kh * kw * c_in)

    # One MXU matmul folds all taps and channels at once (K = kH*kW*C_in).
    out = jnp.dot(patches, w_ref[...], preferred_element_type=jnp.float32)
    out = out + b_ref[...]                       # (1, Cot) broadcasts over rows
    o_ref[...] = out.reshape(bt, out_h * out_w, cot).astype(o_ref.dtype)


def _vmem_limit_bytes():
    # ~75% of physical VMEM: ~96 MiB on v5e/v6e (128 MiB), ~48 MiB on v7x (64 MiB).
    try:
        cap = getattr(pltpu.get_tpu_info(), "vmem_capacity_bytes", None)
    except Exception:
        cap = None
    if not cap:
        return 48 * 1024 * 1024          # safe on every generation
    return int(cap) * 3 // 4


def my_conv2d(x, weight, bias=None, stride=1, padding=0,
              compute_dtype=jnp.float32):
    """Pallas TPU Conv2D matching MyFConv2D semantics.

    x:      (B, C_in, H, W) NCHW
    weight: (C_out, C_in, kH, kW)
    bias:   (C_out,) or None
    compute_dtype: jnp.float32 (default) or jnp.bfloat16 (faster on v6e/v7x)
    returns (B, C_out, OH, OW) float32 NCHW
    """
    assert x.ndim == 4 and weight.ndim == 4, 'weight shape incorrect'
    b, c_in, h, w = x.shape
    c_out, c_in_w, kh, kw = weight.shape
    assert c_in == c_in_w, 'weight shape incorrect'
    s, p = stride, padding

    out_h = (h + 2 * p - kh) // s + 1
    out_w = (w + 2 * p - kw) // s + 1
    h_pad, w_pad = h + 2 * p, w + 2 * p

    # NCHW -> NHWC (channels on lanes); zero-pad spatially in the wrapper.
    x_nhwc = jnp.transpose(x, (0, 2, 3, 1)).astype(compute_dtype)
    if p > 0:
        x_nhwc = jnp.pad(x_nhwc, ((0, 0), (p, p), (p, p), (0, 0)))

    # Lane-dense output: pad C_out up to a multiple of 128 (sliced off below).
    c_out_pad = pl.cdiv(c_out, 128) * 128
    co_tile = 256 if c_out_pad % 256 == 0 else 128
    n_co = c_out_pad // co_tile

    # (C_out, C_in, kH, kW) -> (kH*kW*C_in, C_out_pad): one im2col weight slab.
    k_dim = kh * kw * c_in
    w_mat = jnp.transpose(weight, (2, 3, 1, 0)).reshape(k_dim, c_out)
    w_mat = jnp.pad(w_mat, ((0, 0), (0, c_out_pad - c_out))).astype(compute_dtype)

    if bias is None:
        b_vec = jnp.zeros((1, c_out_pad), jnp.float32)
    else:
        b_vec = jnp.pad(jnp.asarray(bias, jnp.float32), (0, c_out_pad - c_out))
        b_vec = b_vec.reshape(1, c_out_pad)

    # Batch tile: amortize the ~0.35us/step grid overhead, but keep >= 2
    # parallel steps whenever B >= 2 so both v7x TensorCores stay busy.
    vmem_limit = _vmem_limit_bytes()
    itemsize = jnp.dtype(compute_dtype).itemsize
    per_batch = (2 * h_pad * w_pad * c_in * itemsize          # dbl-buffered input
                 + 2 * out_h * out_w * co_tile * 4            # dbl-buffered output
                 + 2 * out_h * out_w * k_dim * 4)             # patches + matmul acc
    budget = vmem_limit // 2
    bt = 1
    for cand in range(1, b + 1):
        if b % cand:
            continue
        if cand * per_batch > budget:
            continue
        if b >= 2 and b // cand < 2:
            continue
        bt = cand

    kernel = functools.partial(
        _conv2d_kernel, kh=kh, kw=kw, stride=s, out_h=out_h, out_w=out_w)

    out_flat = pl.pallas_call(
        kernel,
        out_shape=jax.ShapeDtypeStruct((b, out_h * out_w, c_out_pad),
                                       jnp.float32),
        grid_spec=pltpu.PrefetchScalarGridSpec(
            num_scalar_prefetch=0,
            grid=(b // bt, n_co),
            in_specs=[
                pl.BlockSpec((bt, h_pad, w_pad, c_in),
                             lambda bi, co: (bi, 0, 0, 0)),
                pl.BlockSpec((k_dim, co_tile),
                             lambda bi, co: (0, co)),
                pl.BlockSpec((1, co_tile),
                             lambda bi, co: (0, co)),
            ],
            out_specs=pl.BlockSpec((bt, out_h * out_w, co_tile),
                                   lambda bi, co: (bi, 0, co)),
        ),
        compiler_params=pltpu.CompilerParams(
            dimension_semantics=("parallel", "parallel"),
            vmem_limit_bytes=vmem_limit,
        ),
    )(x_nhwc, w_mat, b_vec)

    # Strip the C_out pad, (B, OH*OW, C_out) -> (B, C_out, OH, OW).
    out = out_flat[..., :c_out].reshape(b, out_h, out_w, c_out)
    return jnp.transpose(out, (0, 3, 1, 2))


def _reference_conv2d(x, weight, bias=None, stride=1, padding=0):
    """Pure-JAX reference mirroring the PyTorch MyFConv2D loop (exact f32 sums)."""
    b, c_in, h, w = x.shape
    c_out, _, kh, kw = weight.shape
    s, p = stride, padding
    x_pad = jnp.pad(x, ((0, 0), (0, 0), (p, p), (p, p)))
    out_h = (h + 2 * p - kh) // s + 1
    out_w = (w + 2 * p - kw) // s + 1
    out = jnp.zeros((b, c_out, out_h, out_w), jnp.float32)
    for oh in range(out_h):
        for ow in range(out_w):
            window = x_pad[:, :, oh * s:oh * s + kh, ow * s:ow * s + kw]
            val = (window[:, None, :, :, :] * weight[None, :, :, :, :]).sum(
                axis=(2, 3, 4))
            if bias is not None:
                val = val + bias[None, :]
            out = out.at[:, :, oh, ow].set(val)
    return out


if __name__ == "__main__":
    key = jax.random.PRNGKey(0)
    kx, kw1, kb1, kw2, kb2 = jax.random.split(key, 5)

    B, C_IN, H, W = 2, 4, 16, 16
    x = jax.random.normal(kx, (B, C_IN, H, W), dtype=jnp.float32)

    # Config 1: C_out=8, k=3, stride=1, padding=1  -> (2, 8, 16, 16)
    C_OUT1, K1, S1, P1 = 8, 3, 1, 1
    w1 = jax.random.normal(kw1, (C_OUT1, C_IN, K1, K1), dtype=jnp.float32)
    b1 = jax.random.normal(kb1, (C_OUT1,), dtype=jnp.float32)
    out1 = jax.block_until_ready(my_conv2d(x, w1, b1, stride=S1, padding=P1))
    ref1 = _reference_conv2d(x, w1, b1, stride=S1, padding=P1)
    assert out1.shape == (B, C_OUT1, 16, 16), out1.shape
    assert jnp.allclose(out1, ref1, atol=2e-2, rtol=2e-2), "mismatch (s=1,p=1)"

    # Config 2: C_out=8, k=2, stride=2, padding=0  -> (2, 8, 8, 8)
    C_OUT2, K2, S2, P2 = 8, 2, 2, 0
    w2 = jax.random.normal(kw2, (C_OUT2, C_IN, K2, K2), dtype=jnp.float32)
    b2 = jax.random.normal(kb2, (C_OUT2,), dtype=jnp.float32)
    out2 = jax.block_until_ready(my_conv2d(x, w2, b2, stride=S2, padding=P2))
    ref2 = _reference_conv2d(x, w2, b2, stride=S2, padding=P2)
    assert out2.shape == (B, C_OUT2, 8, 8), out2.shape
    assert jnp.allclose(out2, ref2, atol=2e-2, rtol=2e-2), "mismatch (s=2,p=0)"

    print("KERNEL_OK")
</pallas_src>

<mosaic_0001>
module attributes {stable_mosaic.version = 11 : i64} {
  func.func @_conv2d_kernel(%arg0: i32, %arg1: i32, %arg2: memref<1x18x18x4xf32, #tpu.memory_space<vmem>>, %arg3: memref<36x128xf32, #tpu.memory_space<vmem>>, %arg4: memref<1x128xf32, #tpu.memory_space<vmem>>, %arg5: memref<1x256x128xf32, #tpu.memory_space<vmem>>) attributes {dimension_semantics = [#tpu.dimension_semantics<parallel>, #tpu.dimension_semantics<parallel>], iteration_bounds = array<i64: 2, 1>, scalar_prefetch = 0 : i64, scratch_operands = 0 : i64, tpu.core_type = #tpu.core_type<tc>, window_params = [{transform_indices = @transform_0, window_bounds = array<i64: 1, 18, 18, 4>}, {transform_indices = @transform_1, window_bounds = array<i64: 36, 128>}, {transform_indices = @transform_2, window_bounds = array<i64: 1, 128>}, {transform_indices = @transform_3, window_bounds = array<i64: 1, 256, 128>}]} {
    %c0 = arith.constant 0 : index
    %c0_0 = arith.constant 0 : index
    %c0_1 = arith.constant 0 : index
    %c0_2 = arith.constant 0 : index
    %0 = vector.load %arg2[%c0, %c0_0, %c0_1, %c0_2] : memref<1x18x18x4xf32, #tpu.memory_space<vmem>>, vector<1x16x16x4xf32>
    %c0_3 = arith.constant 0 : index
    %c0_4 = arith.constant 0 : index
    %c1 = arith.constant 1 : index
    %c0_5 = arith.constant 0 : index
    %1 = vector.load %arg2[%c0_3, %c0_4, %c1, %c0_5] : memref<1x18x18x4xf32, #tpu.memory_space<vmem>>, vector<1x16x16x4xf32>
    %c0_6 = arith.constant 0 : index
    %c0_7 = arith.constant 0 : index
    %c2 = arith.constant 2 : index
    %c0_8 = arith.constant 0 : index
    %2 = vector.load %arg2[%c0_6, %c0_7, %c2, %c0_8] : memref<1x18x18x4xf32, #tpu.memory_space<vmem>>, vector<1x16x16x4xf32>
    %c0_9 = arith.constant 0 : index
    %c1_10 = arith.constant 1 : index
    %c0_11 = arith.constant 0 : index
    %c0_12 = arith.constant 0 : index
    %3 = vector.load %arg2[%c0_9, %c1_10, %c0_11, %c0_12] : memref<1x18x18x4xf32, #tpu.memory_space<vmem>>, vector<1x16x16x4xf32>
    %c0_13 = arith.constant 0 : index
    %c1_14 = arith.constant 1 : index
    %c1_15 = arith.constant 1 : index
    %c0_16 = arith.constant 0 : index
    %4 = vector.load %arg2[%c0_13, %c1_14, %c1_15, %c0_16] : memref<1x18x18x4xf32, #tpu.memory_space<vmem>>, vector<1x16x16x4xf32>
    %c0_17 = arith.constant 0 : index
    %c1_18 = arith.constant 1 : index
    %c2_19 = arith.constant 2 : index
    %c0_20 = arith.constant 0 : index
    %5 = vector.load %arg2[%c0_17, %c1_18, %c2_19, %c0_20] : memref<1x18x18x4xf32, #tpu.memory_space<vmem>>, vector<1x16x16x4xf32>
    %c0_21 = arith.constant 0 : index
    %c2_22 = arith.constant 2 : index
    %c0_23 = arith.constant 0 : index
    %c0_24 = arith.constant 0 : index
    %6 = vector.load %arg2[%c0_21, %c2_22, %c0_23, %c0_24] : memref<1x18x18x4xf32, #tpu.memory_space<vmem>>, vector<1x16x16x4xf32>
    %c0_25 = arith.constant 0 : index
    %c2_26 = arith.constant 2 : index
    %c1_27 = arith.constant 1 : index
    %c0_28 = arith.constant 0 : index
    %7 = vector.load %arg2[%c0_25, %c2_26, %c1_27, %c0_28] : memref<1x18x18x4xf32, #tpu.memory_space<vmem>>, vector<1x16x16x4xf32>
    %c0_29 = arith.constant 0 : index
    %c2_30 = arith.constant 2 : index
    %c2_31 = arith.constant 2 : index
    %c0_32 = arith.constant 0 : index
    %8 = vector.load %arg2[%c0_29, %c2_30, %c2_31, %c0_32] : memref<1x18x18x4xf32, #tpu.memory_space<vmem>>, vector<1x16x16x4xf32>
    %9 = tpu.concatenate %0, %1, %2, %3, %4, %5, %6, %7, %8 in 3 : vector<1x16x16x4xf32>, vector<1x16x16x4xf32>, vector<1x16x16x4xf32>, vector<1x16x16x4xf32>, vector<1x16x16x4xf32>, vector<1x16x16x4xf32>, vector<1x16x16x4xf32>, vector<1x16x16x4xf32>, vector<1x16x16x4xf32> -> vector<1x16x16x36xf32>
    %10 = vector.shape_cast %9 : vector<1x16x16x36xf32> to vector<256x36xf32>
    %c0_33 = arith.constant 0 : index
    %c0_34 = arith.constant 0 : index
    %11 = vector.load %arg3[%c0_33, %c0_34] : memref<36x128xf32, #tpu.memory_space<vmem>>, vector<36x128xf32>
    %cst = arith.constant dense<0.000000e+00> : vector<256x128xf32>
    %12 = tpu.matmul %10, %11, %cst {dimension_numbers = #tpu.dot_dimension_numbers<[1], [0], [0], [1], [0, 0, 1, 1], [], []>} : vector<256x36xf32>, vector<36x128xf32>, vector<256x128xf32> -> vector<256x128xf32>
    %c0_35 = arith.constant 0 : index
    %c0_36 = arith.constant 0 : index
    %13 = vector.load %arg4[%c0_35, %c0_36] : memref<1x128xf32, #tpu.memory_space<vmem>>, vector<1x128xf32>
    %14 = vector.broadcast %13 : vector<1x128xf32> to vector<256x128xf32>
    %15 = arith.addf %12, %14 : vector<256x128xf32>
    %16 = vector.shape_cast %15 : vector<256x128xf32> to vector<1x256x128xf32>
    %c0_37 = arith.constant 0 : index
    %c0_38 = arith.constant 0 : index
    %c0_39 = arith.constant 0 : index
    %17 = vector.load %arg5[%c0_37, %c0_38, %c0_39] : memref<1x256x128xf32, #tpu.memory_space<vmem>>, vector<1x256x128xf32>
    tpu.vector_store %arg5[%c0_37, %c0_38, %c0_39], %16 {strides = array<i32>} : memref<1x256x128xf32, #tpu.memory_space<vmem>>, vector<1x256x128xf32>,
    return
  }
  func.func @transform_0(%arg0: i32, %arg1: i32) -> (i32, i32, i32, i32) {
    %c0_i32 = arith.constant 0 : i32
    %c0_i32_0 = arith.constant 0 : i32
    %c0_i32_1 = arith.constant 0 : i32
    %c0_i32_2 = arith.constant 0 : i32
    return %arg0, %c0_i32, %c0_i32_0, %c0_i32_1 : i32, i32, i32, i32
  }
  func.func @transform_1(%arg0: i32, %arg1: i32) -> (i32, i32) {
    %c0_i32 = arith.constant 0 : i32
    %c0_i32_0 = arith.constant 0 : i32
    return %c0_i32, %arg1 : i32, i32
  }
  func.func @transform_2(%arg0: i32, %arg1: i32) -> (i32, i32) {
    %c0_i32 = arith.constant 0 : i32
    %c0_i32_0 = arith.constant 0 : i32
    return %c0_i32, %arg1 : i32, i32
  }
  func.func @transform_3(%arg0: i32, %arg1: i32) -> (i32, i32, i32) {
    %c0_i32 = arith.constant 0 : i32
    %c0_i32_0 = arith.constant 0 : i32
    return %arg0, %c0_i32, %arg1 : i32, i32, i32
  }
}

</mosaic_0001>

<llo_original>
// kernel: tpu_custom_call.1
$region0: #{tpu_custom_call.1}
  #allocation0 [shape = 'u32[]', space=smem, size = 0x4, offset = 0x4, fixed_abs, tag = 'smem constant byte address 0x4 - core index']
  #allocation1 [shape = 'u32[72,128]{1,0:T(1,128)}', space=vmem, size = 0x9000, scoped, tag = 'internal scratch']
  %s0 = inlined_call_operand.vmem [shape: f32[2,18,18,4], index: 0, kind: input, shape index: {}]
  %s1 = inlined_call_operand.vmem [shape: f32[36,128], index: 1, kind: input, shape index: {}]
  %s2 = inlined_call_operand.vmem [shape: f32[1,128], index: 2, kind: input, shape index: {}]
  %s3 = inlined_call_operand.hbm [shape: f32[2,256,128], index: 3, kind: output, shape index: {}]
  %s4 = sld [smem:[#allocation0]]
  $region45: #{tpu_custom_call.1} parent=0
    _
  %s6 = ssub.s32 1, %s4
  %s7 = scalar_select 0, %s6, %s4
  $region1: #{tpu_custom_call.1} parent=0
    #allocation2 [shape = 'u8[262144]{0}', space=vmem, size = 0x40000, scoped, tag = 'output window, operand 0']
    #allocation3 [shape = 's32[2]{0}', space=sflag, size = 0x8, scoped, tag = 'scoped memory for tpu_custom_call.1']
    %8 = vsyncpa [#allocation3], 0
    %s9 = scalar_lea.sflag [#allocation3], 1
    %10 = vsyncpa %s9, 0
    loop: start=0, step=1, limit=4
    $region2: #{tpu_custom_call.1} parent=1 // loop_pre_header
      _
    $region3: #{tpu_custom_call.1} parent=1 // loop_header
      %s12 = sphi 0, %s16
      %p13 = scmp.ge.s32.totalorder %s12, 4
      %s19 = sphi 0, %s31
      %s20 = sphi 0, %s27
      %s21 = sphi 0, %s19
      %s22 = sphi 0, %s20
      %s23 = sphi 0, %s21
      %s24 = sphi 0, %s22
      %s34 = sphi 0, %s36
      %s37 = sphi 0, %s34
      %s38 = sphi 0, %s37
      %s54 = sphi 0, %s38
      %s60 = sphi 0, %s62
      %s63 = sphi 0, %s60
      %s64 = sphi 0, %s63
      %s80 = sphi 0, %s64
      %s86 = sphi 0, %s88
      %s89 = sphi 0, %s86
      %s90 = sphi 0, %s89
      %s106 = sphi 0, %s90
      %s114 = sphi 0, %s116
      %s117 = sphi 0, %s114
      %s118 = sphi 0, %s117
      %s134 = sphi 0, %s118
    $region4: #{tpu_custom_call.1} parent=1 // loop_header_branch
      %15 = sbr.rel (%p13) target = $region8
    $region5: #{tpu_custom_call.1} parent=1 // loop_body
      %s17 = ssub.s32 %s12, 1
      %s18 = ssub.s32 %s12, 2
      %s25 = sadd.s32 1, %s20
      %p26 = scmp.ge.s32.totalorder %s25, 1
      %s27 = scalar_select %p26, 0, %s25
      %s28 = sadd.s32 1, %s19
      %s29 = scalar_select %p26, %s28, %s19
      %p30 = scmp.ge.s32.totalorder %s29, 2
      %s31 = scalar_select %p30, 0, %s29
      %s32 = ssub.s32 %s19, %s31
      %p33 = scmp.eq.s32.totalorder %s32, 0
      %s35 = sadd.s32 %s34, 1
      %s36 = scalar_select %p33, %s34, %s35
      %p39 = pneg %p33
      %p40 = scmp.eq.s32.totalorder %s12, 1
      %p41 = por %p39, %p40
      %p42 = scmp.ne.s32.totalorder %s34, %s37
      %p43 = scmp.eq.s32.totalorder %s12, 0
      %p44 = por %p42, %p43
      %p45 = scmp.ne.s32.totalorder %s34, %s37
      %p46 = scmp.eq.s32.totalorder %s17, 1
      %p47 = por %p45, %p46
      %p48 = scmp.ne.s32.totalorder %s37, %s38
      %p49 = scmp.eq.s32.totalorder %s17, 0
      %p50 = por %p48, %p49
      %p51 = scmp.ne.s32.totalorder %s37, %s38
      %p52 = scmp.eq.s32.totalorder %s18, 1
      %p53 = por %p51, %p52
      %p55 = scmp.ne.s32.totalorder %s38, %s54
      %p56 = scmp.eq.s32.totalorder %s18, 0
      %p57 = por %p55, %p56
      %s58 = ssub.s32 %s20, %s27
      %p59 = scmp.eq.s32.totalorder %s58, 0
      %s61 = sadd.s32 %s60, 1
      %s62 = scalar_select %p59, %s60, %s61
      %p65 = pneg %p59
      %p66 = scmp.eq.s32.totalorder %s12, 1
      %p67 = por %p65, %p66
      %p68 = scmp.ne.s32.totalorder %s60, %s63
      %p69 = scmp.eq.s32.totalorder %s12, 0
      %p70 = por %p68, %p69
      %p71 = scmp.ne.s32.totalorder %s60, %s63
      %p72 = scmp.eq.s32.totalorder %s17, 1
      %p73 = por %p71, %p72
      %p74 = scmp.ne.s32.totalorder %s63, %s64
      %p75 = scmp.eq.s32.totalorder %s17, 0
      %p76 = por %p74, %p75
      %p77 = scmp.ne.s32.totalorder %s63, %s64
      %p78 = scmp.eq.s32.totalorder %s18, 1
      %p79 = por %p77, %p78
      %p81 = scmp.ne.s32.totalorder %s64, %s80
      %p82 = scmp.eq.s32.totalorder %s18, 0
      %p83 = por %p81, %p82
      %s84 = ssub.s32 %s20, %s27
      %p85 = scmp.eq.s32.totalorder %s84, 0
      %s87 = sadd.s32 %s86, 1
      %s88 = scalar_select %p85, %s86, %s87
      %p91 = pneg %p85
      %p92 = scmp.eq.s32.totalorder %s12, 1
      %p93 = por %p91, %p92
      %p94 = scmp.ne.s32.totalorder %s86, %s89
      %p95 = scmp.eq.s32.totalorder %s12, 0
      %p96 = por %p94, %p95
      %p97 = scmp.ne.s32.totalorder %s86, %s89
      %p98 = scmp.eq.s32.totalorder %s17, 1
      %p99 = por %p97, %p98
      %p100 = scmp.ne.s32.totalorder %s89, %s90
      %p101 = scmp.eq.s32.totalorder %s17, 0
      %p102 = por %p100, %p101
      %p103 = scmp.ne.s32.totalorder %s89, %s90
      %p104 = scmp.eq.s32.totalorder %s18, 1
      %p105 = por %p103, %p104
      %p107 = scmp.ne.s32.totalorder %s90, %s106
      %p108 = scmp.eq.s32.totalorder %s18, 0
      %p109 = por %p107, %p108
      %s110 = ssub.s32 %s19, %s31
      %s111 = ssub.s32 %s20, %s27
      %s112 = sor.u32 %s110, %s111
      %p113 = scmp.eq.s32.totalorder %s112, 0
      %s115 = sadd.s32 %s114, 1
      %s116 = scalar_select %p113, %s114, %s115
      %p119 = pneg %p113
      %p120 = scmp.eq.s32.totalorder %s12, 1
      %p121 = por %p119, %p120
      %p122 = scmp.ne.s32.totalorder %s114, %s117
      %p123 = scmp.eq.s32.totalorder %s12, 0
      %p124 = por %p122, %p123
      %p125 = scmp.ne.s32.totalorder %s114, %s117
      %p126 = scmp.eq.s32.totalorder %s17, 1
      %p127 = por %p125, %p126
      %p128 = scmp.ne.s32.totalorder %s117, %s118
      %p129 = scmp.eq.s32.totalorder %s17, 0
      %p130 = por %p128, %p129
      %p131 = scmp.ne.s32.totalorder %s117, %s118
      %p132 = scmp.eq.s32.totalorder %s18, 1
      %p133 = por %p131, %p132
      %p135 = scmp.ne.s32.totalorder %s118, %s134
      %p136 = scmp.eq.s32.totalorder %s18, 0
      %p137 = por %p135, %p136
      %p138 = scmp.le.s32.totalorder 1, %s12
      %p139 = scmp.lt.s32.totalorder %s12, 3
      %p140 = pnand %p138, %p139
      %p141 = pneg %p140
      // Predicated region
      $region9: #{tpu_custom_call.1} parent=5 // pred_check
        _
      $region10: #{tpu_custom_call.1} parent=5 // pred_check_branch
        %143 = sbr.rel (%p140) target = $region12
      $region11: #{tpu_custom_call.1} parent=5 // pred_region
        %s144 = ssub.s32 %s12, 1
        // Predicated region
        $region13: #{tpu_custom_call.1} parent=11 // pred_check
          %p145 = pneg %p76
        $region14: #{tpu_custom_call.1} parent=11 // pred_check_branch
          %147 = sbr.rel (%p145) target = $region16
        $region15: #{tpu_custom_call.1} parent=11 // pred_region
          %p148 = scmp.lt.s32.totalorder %s22, 0
          %s149 = scalar_select %p148, %s22, 0
          %s150 = smul.addr %s149, 8
          %s151 = scalar_lea.vmem %s1, %s150
        $region16: #{tpu_custom_call.1} parent=11 // pred_fallthru
          _
        // Predicated region
        $region17: #{tpu_custom_call.1} parent=11 // pred_check
          %p152 = pneg %p102
        $region18: #{tpu_custom_call.1} parent=11 // pred_check_branch
          %154 = sbr.rel (%p152) target = $region20
        $region19: #{tpu_custom_call.1} parent=11 // pred_region
          %p155 = scmp.lt.s32.totalorder %s22, 0
          %s156 = scalar_select %p155, %s22, 0
          %s157 = scalar_lea.vmem %s2, %s156
        $region20: #{tpu_custom_call.1} parent=11 // pred_fallthru
          _
      $region12: #{tpu_custom_call.1} parent=5 // pred_fallthru
        _
      %p158 = scmp.lt.s32.totalorder %s12, 2
      // Predicated region
      $region21: #{tpu_custom_call.1} parent=5 // pred_check
        %p159 = pneg %p158
      $region22: #{tpu_custom_call.1} parent=5 // pred_check_branch
        %161 = sbr.rel (%p159) target = $region24
      $region23: #{tpu_custom_call.1} parent=5 // pred_region
        // Predicated region
        $region25: #{tpu_custom_call.1} parent=23 // pred_check
          %p162 = pneg %p44
        $region26: #{tpu_custom_call.1} parent=23 // pred_check_branch
          %164 = sbr.rel (%p162) target = $region28
        $region27: #{tpu_custom_call.1} parent=23 // pred_region
          %p165 = scmp.lt.s32.totalorder %s19, 1
          %s166 = scalar_select %p165, %s19, 1
          %s167 = smul.addr %s166, 54
          %s168 = smul.addr %s167, 8
          %s169 = scalar_lea.vmem %s0, %s168
        $region28: #{tpu_custom_call.1} parent=23 // pred_fallthru
          _
      $region24: #{tpu_custom_call.1} parent=5 // pred_fallthru
        _
      %p170 = scmp.le.s32.totalorder 1, %s12
      %p171 = scmp.lt.s32.totalorder %s12, 3
      %p172 = pnand %p170, %p171
      %p173 = pneg %p172
      // Predicated region
      $region29: #{tpu_custom_call.1} parent=5 // pred_check
        _
      $region30: #{tpu_custom_call.1} parent=5 // pred_check_branch
        %175 = sbr.rel (%p172) target = $region32
      $region31: #{tpu_custom_call.1} parent=5 // pred_region
        %s176 = ssub.s32 %s12, 1
        %p177 = scmp.lt.s32.totalorder %s21, 1
        %s178 = scalar_select %p177, %s21, 1
        %s179 = smul.addr %s178, 54
        %s180 = smul.addr %s179, 8
        %s181 = scalar_lea.vmem %s0, %s180
        %p182 = pneg %p50
        %p183 = pneg %p47
        %p184 = scmp.lt.s32.totalorder %s22, 0
        %s185 = scalar_select %p184, %s22, 0
        %s186 = smul.addr %s185, 8
        %s187 = scalar_lea.vmem %s1, %s186
        %p188 = pneg %p76
        %p189 = pneg %p73
        %p190 = scmp.lt.s32.totalorder %s22, 0
        %s191 = scalar_select %p190, %s22, 0
        %s192 = scalar_lea.vmem %s2, %s191
        %p193 = pneg %p102
        %p194 = pneg %p99
        %p195 = pneg %p130
        %p196 = pneg %p127
        %s197 = sand.u32 %s117, 1
        %s198 = scalar_lea.sflag [#allocation3], %s197
        %s199 = sand.u32 %s117, 1
        %s200 = smul.addr %s199, 256
        %s201 = scalar_lea.vmem [#allocation2], %s200
        %p202 = scmp.lt.s32.totalorder %s21, 1
        %s203 = scalar_select %p202, %s21, 1
        %s204 = smul.addr %s203, 54
        %s205 = smul.addr %s204, 8
        %s206 = scalar_lea.vmem %s0, %s205
        %p207 = scmp.lt.s32.totalorder %s22, 0
        %s208 = scalar_select %p207, %s22, 0
        %s209 = smul.addr %s208, 8
        %s210 = scalar_lea.vmem %s1, %s209
        %p211 = scmp.lt.s32.totalorder %s22, 0
        %s212 = scalar_select %p211, %s22, 0
        %s213 = scalar_lea.vmem %s2, %s212
        %v214 = vld [vmem:[%s206] sm:$0xff]
        %v215 = vld [vmem:[%s206 + $0x8] sm:$0xff]
        %v216 = vld [vmem:[%s206 + $0x18] sm:$0xff]
        %v217 = vld [vmem:[%s206 + $0x20] sm:$0xff]
        %v218 = vld [vmem:[%s206 + $0x30] sm:$0xff]
        %v219 = vld [vmem:[%s206 + $0x38] sm:$0xff]
        %v220 = vld [vmem:[%s206 + $0x48] sm:$0xff]
        %v221 = vld [vmem:[%s206 + $0x50] sm:$0xff]
        %v222 = vld [vmem:[%s206 + $0x60] sm:$0xff]
        %v223 = vld [vmem:[%s206 + $0x68] sm:$0xff]
        %v224 = vld [vmem:[%s206 + $0x78] sm:$0xff]
        %v225 = vld [vmem:[%s206 + $0x80] sm:$0xff]
        %v226 = vld [vmem:[%s206 + $0x90] sm:$0xff]
        %v227 = vld [vmem:[%s206 + $0x98] sm:$0xff]
        %v228 = vld [vmem:[%s206 + $0xa8] sm:$0xff]
        %v229 = vld [vmem:[%s206 + $0xb0] sm:$0xff]
        %v230 = vld [vmem:[%s206 + $0xc0] sm:$0xff]
        %v231 = vld [vmem:[%s206 + $0xc8] sm:$0xff]
        %v232 = vld [vmem:[%s206 + $0xd8] sm:$0xff]
        %v233 = vld [vmem:[%s206 + $0xe0] sm:$0xff]
        %v234 = vld [vmem:[%s206 + $0xf0] sm:$0xff]
        %v235 = vld [vmem:[%s206 + $0xf8] sm:$0xff]
        %v236 = vld [vmem:[%s206 + $0x108] sm:$0xff]
        %v237 = vld [vmem:[%s206 + $0x110] sm:$0xff]
        %v238 = vld [vmem:[%s206 + $0x120] sm:$0xff]
        %v239 = vld [vmem:[%s206 + $0x128] sm:$0xff]
        %v240 = vld [vmem:[%s206 + $0x138] sm:$0xff]
        %v241 = vld [vmem:[%s206 + $0x140] sm:$0xff]
        %v242 = vld [vmem:[%s206 + $0x150] sm:$0xff]
        %v243 = vld [vmem:[%s206 + $0x158] sm:$0xff]
        %v244 = vld [vmem:[%s206 + $0x168] sm:$0xff]
        %v245 = vld [vmem:[%s206 + $0x170] sm:$0xff]
        %v246 = vld [vmem:[%s206 + $0x1] sm:$0xff]
        %v247 = vld [vmem:[%s206 + $0x9] sm:$0xff]
        %v248 = vld [vmem:[%s206 + $0x19] sm:$0xff]
        %v249 = vld [vmem:[%s206 + $0x21] sm:$0xff]
        %v250 = vld [vmem:[%s206 + $0x31] sm:$0xff]
        %v251 = vld [vmem:[%s206 + $0x39] sm:$0xff]
        %v252 = vld [vmem:[%s206 + $0x49] sm:$0xff]
        %v253 = vld [vmem:[%s206 + $0x51] sm:$0xff]
        %v254 = vld [vmem:[%s206 + $0x61] sm:$0xff]
        %v255 = vld [vmem:[%s206 + $0x69] sm:$0xff]
        %v256 = vld [vmem:[%s206 + $0x79] sm:$0xff]
        %v257 = vld [vmem:[%s206 + $0x81] sm:$0xff]
        %v258 = vld [vmem:[%s206 + $0x91] sm:$0xff]
        %v259 = vld [vmem:[%s206 + $0x99] sm:$0xff]
        %v260 = vld [vmem:[%s206 + $0xa9] sm:$0xff]
        %v261 = vld [vmem:[%s206 + $0xb1] sm:$0xff]
        %v262 = vld [vmem:[%s206 + $0xc1] sm:$0xff]
        %v263 = vld [vmem:[%s206 + $0xc9] sm:$0xff]
        %v264 = vld [vmem:[%s206 + $0xd9] sm:$0xff]
        %v265 = vld [vmem:[%s206 + $0xe1] sm:$0xff]
        %v266 = vld [vmem:[%s206 + $0xf1] sm:$0xff]
        %v267 = vld [vmem:[%s206 + $0xf9] sm:$0xff]
        %v268 = vld [vmem:[%s206 + $0x109] sm:$0xff]
        %v269 = vld [vmem:[%s206 + $0x111] sm:$0xff]
        %v270 = vld [vmem:[%s206 + $0x121] sm:$0xff]
        %v271 = vld [vmem:[%s206 + $0x129] sm:$0xff]
        %v272 = vld [vmem:[%s206 + $0x139] sm:$0xff]
        %v273 = vld [vmem:[%s206 + $0x141] sm:$0xff]
        %v274 = vld [vmem:[%s206 + $0x151] sm:$0xff]
        %v275 = vld [vmem:[%s206 + $0x159] sm:$0xff]
        %v276 = vld [vmem:[%s206 + $0x169] sm:$0xff]
        %v277 = vld [vmem:[%s206 + $0x171] sm:$0xff]
        %v278 = vld [vmem:[%s206 + $0x2] sm:$0xff]
        %v279 = vld [vmem:[%s206 + $0xa] sm:$0xff]
        %v280 = vld [vmem:[%s206 + $0x1a] sm:$0xff]
        %v281 = vld [vmem:[%s206 + $0x22] sm:$0xff]
        %v282 = vld [vmem:[%s206 + $0x32] sm:$0xff]
        %v283 = vld [vmem:[%s206 + $0x3a] sm:$0xff]
        %v284 = vld [vmem:[%s206 + $0x4a] sm:$0xff]
        %v285 = vld [vmem:[%s206 + $0x52] sm:$0xff]
        %v286 = vld [vmem:[%s206 + $0x62] sm:$0xff]
        %v287 = vld [vmem:[%s206 + $0x6a] sm:$0xff]
        %v288 = vld [vmem:[%s206 + $0x7a] sm:$0xff]
        %v289 = vld [vmem:[%s206 + $0x82] sm:$0xff]
        %v290 = vld [vmem:[%s206 + $0x92] sm:$0xff]
        %v291 = vld [vmem:[%s206 + $0x9a] sm:$0xff]
        %v292 = vld [vmem:[%s206 + $0xaa] sm:$0xff]
        %v293 = vld [vmem:[%s206 + $0xb2] sm:$0xff]
        %v294 = vld [vmem:[%s206 + $0xc2] sm:$0xff]
        %v295 = vld [vmem:[%s206 + $0xca] sm:$0xff]
        %v296 = vld [vmem:[%s206 + $0xda] sm:$0xff]
        %v297 = vld [vmem:[%s206 + $0xe2] sm:$0xff]
        %v298 = vld [vmem:[%s206 + $0xf2] sm:$0xff]
        %v299 = vld [vmem:[%s206 + $0xfa] sm:$0xff]
        %v300 = vld [vmem:[%s206 + $0x10a] sm:$0xff]
        %v301 = vld [vmem:[%s206 + $0x112] sm:$0xff]
        %v302 = vld [vmem:[%s206 + $0x122] sm:$0xff]
        %v303 = vld [vmem:[%s206 + $0x12a] sm:$0xff]
        %v304 = vld [vmem:[%s206 + $0x13a] sm:$0xff]
        %v305 = vld [vmem:[%s206 + $0x142] sm:$0xff]
        %v306 = vld [vmem:[%s206 + $0x152] sm:$0xff]
        %v307 = vld [vmem:[%s206 + $0x15a] sm:$0xff]
        %v308 = vld [vmem:[%s206 + $0x16a] sm:$0xff]
        %v309 = vld [vmem:[%s206 + $0x172] sm:$0xff]
        %s310 = scalar_lea.vmem %s206, 24
        %v311 = vld [vmem:[%s310] sm:$0xff]
        %v312 = vld [vmem:[%s310 + $0x8] sm:$0xff]
        %v313 = vld [vmem:[%s310 + $0x18] sm:$0xff]
        %v314 = vld [vmem:[%s310 + $0x20] sm:$0xff]
        %v315 = vld [vmem:[%s310 + $0x30] sm:$0xff]
        %v316 = vld [vmem:[%s310 + $0x38] sm:$0xff]
        %v317 = vld [vmem:[%s310 + $0x48] sm:$0xff]
        %v318 = vld [vmem:[%s310 + $0x50] sm:$0xff]
        %v319 = vld [vmem:[%s310 + $0x60] sm:$0xff]
        %v320 = vld [vmem:[%s310 + $0x68] sm:$0xff]
        %v321 = vld [vmem:[%s310 + $0x78] sm:$0xff]
        %v322 = vld [vmem:[%s310 + $0x80] sm:$0xff]
        %v323 = vld [vmem:[%s310 + $0x90] sm:$0xff]
        %v324 = vld [vmem:[%s310 + $0x98] sm:$0xff]
        %v325 = vld [vmem:[%s310 + $0xa8] sm:$0xff]
        %v326 = vld [vmem:[%s310 + $0xb0] sm:$0xff]
        %v327 = vld [vmem:[%s310 + $0xc0] sm:$0xff]
        %v328 = vld [vmem:[%s310 + $0xc8] sm:$0xff]
        %v329 = vld [vmem:[%s310 + $0xd8] sm:$0xff]
        %v330 = vld [vmem:[%s310 + $0xe0] sm:$0xff]
        %v331 = vld [vmem:[%s310 + $0xf0] sm:$0xff]
        %v332 = vld [vmem:[%s310 + $0xf8] sm:$0xff]
        %v333 = vld [vmem:[%s310 + $0x108] sm:$0xff]
        %v334 = vld [vmem:[%s310 + $0x110] sm:$0xff]
        %v335 = vld [vmem:[%s310 + $0x120] sm:$0xff]
        %v336 = vld [vmem:[%s310 + $0x128] sm:$0xff]
        %v337 = vld [vmem:[%s310 + $0x138] sm:$0xff]
        %v338 = vld [vmem:[%s310 + $0x140] sm:$0xff]
        %v339 = vld [vmem:[%s310 + $0x150] sm:$0xff]
        %v340 = vld [vmem:[%s310 + $0x158] sm:$0xff]
        %v341 = vld [vmem:[%s310 + $0x168] sm:$0xff]
        %v342 = vld [vmem:[%s310 + $0x170] sm:$0xff]
        %v343 = vld [vmem:[%s310 + $0x1] sm:$0xff]
        %v344 = vld [vmem:[%s310 + $0x9] sm:$0xff]
        %v345 = vld [vmem:[%s310 + $0x19] sm:$0xff]
        %v346 = vld [vmem:[%s310 + $0x21] sm:$0xff]
        %v347 = vld [vmem:[%s310 + $0x31] sm:$0xff]
        %v348 = vld [vmem:[%s310 + $0x39] sm:$0xff]
        %v349 = vld [vmem:[%s310 + $0x49] sm:$0xff]
        %v350 = vld [vmem:[%s310 + $0x51] sm:$0xff]
        %v351 = vld [vmem:[%s310 + $0x61] sm:$0xff]
        %v352 = vld [vmem:[%s310 + $0x69] sm:$0xff]
        %v353 = vld [vmem:[%s310 + $0x79] sm:$0xff]
        %v354 = vld [vmem:[%s310 + $0x81] sm:$0xff]
        %v355 = vld [vmem:[%s310 + $0x91] sm:$0xff]
        %v356 = vld [vmem:[%s310 + $0x99] sm:$0xff]
        %v357 = vld [vmem:[%s310 + $0xa9] sm:$0xff]
        %v358 = vld [vmem:[%s310 + $0xb1] sm:$0xff]
        %v359 = vld [vmem:[%s310 + $0xc1] sm:$0xff]
        %v360 = vld [vmem:[%s310 + $0xc9] sm:$0xff]
        %v361 = vld [vmem:[%s310 + $0xd9] sm:$0xff]
        %v362 = vld [vmem:[%s310 + $0xe1] sm:$0xff]
        %v363 = vld [vmem:[%s310 + $0xf1] sm:$0xff]
        %v364 = vld [vmem:[%s310 + $0xf9] sm:$0xff]
        %v365 = vld [vmem:[%s310 + $0x109] sm:$0xff]
        %v366 = vld [vmem:[%s310 + $0x111] sm:$0xff]
        %v367 = vld [vmem:[%s310 + $0x121] sm:$0xff]
        %v368 = vld [vmem:[%s310 + $0x129] sm:$0xff]
        %v369 = vld [vmem:[%s310 + $0x139] sm:$0xff]
        %v370 = vld [vmem:[%s310 + $0x141] sm:$0xff]
        %v371 = vld [vmem:[%s310 + $0x151] sm:$0xff]
        %v372 = vld [vmem:[%s310 + $0x159] sm:$0xff]
        %v373 = vld [vmem:[%s310 + $0x169] sm:$0xff]
        %v374 = vld [vmem:[%s310 + $0x171] sm:$0xff]
        %v375 = vld [vmem:[%s310 + $0x2] sm:$0xff]
        %v376 = vld [vmem:[%s310 + $0xa] sm:$0xff]
        %v377 = vld [vmem:[%s310 + $0x1a] sm:$0xff]
        %v378 = vld [vmem:[%s310 + $0x22] sm:$0xff]
        %v379 = vld [vmem:[%s310 + $0x32] sm:$0xff]
        %v380 = vld [vmem:[%s310 + $0x3a] sm:$0xff]
        %v381 = vld [vmem:[%s310 + $0x4a] sm:$0xff]
        %v382 = vld [vmem:[%s310 + $0x52] sm:$0xff]
        %v383 = vld [vmem:[%s310 + $0x62] sm:$0xff]
        %v384 = vld [vmem:[%s310 + $0x6a] sm:$0xff]
        %v385 = vld [vmem:[%s310 + $0x7a] sm:$0xff]
        %v386 = vld [vmem:[%s310 + $0x82] sm:$0xff]
        %v387 = vld [vmem:[%s310 + $0x92] sm:$0xff]
        %v388 = vld [vmem:[%s310 + $0x9a] sm:$0xff]
        %v389 = vld [vmem:[%s310 + $0xaa] sm:$0xff]
        %v390 = vld [vmem:[%s310 + $0xb2] sm:$0xff]
        %v391 = vld [vmem:[%s310 + $0xc2] sm:$0xff]
        %v392 = vld [vmem:[%s310 + $0xca] sm:$0xff]
        %v393 = vld [vmem:[%s310 + $0xda] sm:$0xff]
        %v394 = vld [vmem:[%s310 + $0xe2] sm:$0xff]
        %v395 = vld [vmem:[%s310 + $0xf2] sm:$0xff]
        %v396 = vld [vmem:[%s310 + $0xfa] sm:$0xff]
        %v397 = vld [vmem:[%s310 + $0x10a] sm:$0xff]
        %v398 = vld [vmem:[%s310 + $0x112] sm:$0xff]
        %v399 = vld [vmem:[%s310 + $0x122] sm:$0xff]
        %v400 = vld [vmem:[%s310 + $0x12a] sm:$0xff]
        %v401 = vld [vmem:[%s310 + $0x13a] sm:$0xff]
        %v402 = vld [vmem:[%s310 + $0x142] sm:$0xff]
        %v403 = vld [vmem:[%s310 + $0x152] sm:$0xff]
        %v404 = vld [vmem:[%s310 + $0x15a] sm:$0xff]
        %v405 = vld [vmem:[%s310 + $0x16a] sm:$0xff]
        %v406 = vld [vmem:[%s310 + $0x172] sm:$0xff]
        %s407 = scalar_lea.vmem %s206, 48
        %v408 = vld [vmem:[%s407] sm:$0xff]
        %v409 = vld [vmem:[%s407 + $0x8] sm:$0xff]
        %v410 = vld [vmem:[%s407 + $0x18] sm:$0xff]
        %v411 = vld [vmem:[%s407 + $0x20] sm:$0xff]
        %v412 = vld [vmem:[%s407 + $0x30] sm:$0xff]
        %v413 = vld [vmem:[%s407 + $0x38] sm:$0xff]
        %v414 = vld [vmem:[%s407 + $0x48] sm:$0xff]
        %v415 = vld [vmem:[%s407 + $0x50] sm:$0xff]
        %v416 = vld [vmem:[%s407 + $0x60] sm:$0xff]
        %v417 = vld [vmem:[%s407 + $0x68] sm:$0xff]
        %v418 = vld [vmem:[%s407 + $0x78] sm:$0xff]
        %v419 = vld [vmem:[%s407 + $0x80] sm:$0xff]
        %v420 = vld [vmem:[%s407 + $0x90] sm:$0xff]
        %v421 = vld [vmem:[%s407 + $0x98] sm:$0xff]
        %v422 = vld [vmem:[%s407 + $0xa8] sm:$0xff]
        %v423 = vld [vmem:[%s407 + $0xb0] sm:$0xff]
        %v424 = vld [vmem:[%s407 + $0xc0] sm:$0xff]
        %v425 = vld [vmem:[%s407 + $0xc8] sm:$0xff]
        %v426 = vld [vmem:[%s407 + $0xd8] sm:$0xff]
        %v427 = vld [vmem:[%s407 + $0xe0] sm:$0xff]
        %v428 = vld [vmem:[%s407 + $0xf0] sm:$0xff]
        %v429 = vld [vmem:[%s407 + $0xf8] sm:$0xff]
        %v430 = vld [vmem:[%s407 + $0x108] sm:$0xff]
        %v431 = vld [vmem:[%s407 + $0x110] sm:$0xff]
        %v432 = vld [vmem:[%s407 + $0x120] sm:$0xff]
        %v433 = vld [vmem:[%s407 + $0x128] sm:$0xff]
        %v434 = vld [vmem:[%s407 + $0x138] sm:$0xff]
        %v435 = vld [vmem:[%s407 + $0x140] sm:$0xff]
        %v436 = vld [vmem:[%s407 + $0x150] sm:$0xff]
        %v437 = vld [vmem:[%s407 + $0x158] sm:$0xff]
        %v438 = vld [vmem:[%s407 + $0x168] sm:$0xff]
        %v439 = vld [vmem:[%s407 + $0x170] sm:$0xff]
        %v440 = vld [vmem:[%s407 + $0x1] sm:$0xff]
        %v441 = vld [vmem:[%s407 + $0x9] sm:$0xff]
        %v442 = vld [vmem:[%s407 + $0x19] sm:$0xff]
        %v443 = vld [vmem:[%s407 + $0x21] sm:$0xff]
        %v444 = vld [vmem:[%s407 + $0x31] sm:$0xff]
        %v445 = vld [vmem:[%s407 + $0x39] sm:$0xff]
        %v446 = vld [vmem:[%s407 + $0x49] sm:$0xff]
        %v447 = vld [vmem:[%s407 + $0x51] sm:$0xff]
        %v448 = vld [vmem:[%s407 + $0x61] sm:$0xff]
        %v449 = vld [vmem:[%s407 + $0x69] sm:$0xff]
        %v450 = vld [vmem:[%s407 + $0x79] sm:$0xff]
        %v451 = vld [vmem:[%s407 + $0x81] sm:$0xff]
        %v452 = vld [vmem:[%s407 + $0x91] sm:$0xff]
        %v453 = vld [vmem:[%s407 + $0x99] sm:$0xff]
        %v454 = vld [vmem:[%s407 + $0xa9] sm:$0xff]
        %v455 = vld [vmem:[%s407 + $0xb1] sm:$0xff]
        %v456 = vld [vmem:[%s407 + $0xc1] sm:$0xff]
        %v457 = vld [vmem:[%s407 + $0xc9] sm:$0xff]
        %v458 = vld [vmem:[%s407 + $0xd9] sm:$0xff]
        %v459 = vld [vmem:[%s407 + $0xe1] sm:$0xff]
        %v460 = vld [vmem:[%s407 + $0xf1] sm:$0xff]
        %v461 = vld [vmem:[%s407 + $0xf9] sm:$0xff]
        %v462 = vld [vmem:[%s407 + $0x109] sm:$0xff]
        %v463 = vld [vmem:[%s407 + $0x111] sm:$0xff]
        %v464 = vld [vmem:[%s407 + $0x121] sm:$0xff]
        %v465 = vld [vmem:[%s407 + $0x129] sm:$0xff]
        %v466 = vld [vmem:[%s407 + $0x139] sm:$0xff]
        %v467 = vld [vmem:[%s407 + $0x141] sm:$0xff]
        %v468 = vld [vmem:[%s407 + $0x151] sm:$0xff]
        %v469 = vld [vmem:[%s407 + $0x159] sm:$0xff]
        %v470 = vld [vmem:[%s407 + $0x169] sm:$0xff]
        %v471 = vld [vmem:[%s407 + $0x171] sm:$0xff]
        %v472 = vld [vmem:[%s407 + $0x2] sm:$0xff]
        %v473 = vld [vmem:[%s407 + $0xa] sm:$0xff]
        %v474 = vld [vmem:[%s407 + $0x1a] sm:$0xff]
        %v475 = vld [vmem:[%s407 + $0x22] sm:$0xff]
        %v476 = vld [vmem:[%s407 + $0x32] sm:$0xff]
        %v477 = vld [vmem:[%s407 + $0x3a] sm:$0xff]
        %v478 = vld [vmem:[%s407 + $0x4a] sm:$0xff]
        %v479 = vld [vmem:[%s407 + $0x52] sm:$0xff]
        %v480 = vld [vmem:[%s407 + $0x62] sm:$0xff]
        %v481 = vld [vmem:[%s407 + $0x6a] sm:$0xff]
        %v482 = vld [vmem:[%s407 + $0x7a] sm:$0xff]
        %v483 = vld [vmem:[%s407 + $0x82] sm:$0xff]
        %v484 = vld [vmem:[%s407 + $0x92] sm:$0xff]
        %v485 = vld [vmem:[%s407 + $0x9a] sm:$0xff]
        %v486 = vld [vmem:[%s407 + $0xaa] sm:$0xff]
        %v487 = vld [vmem:[%s407 + $0xb2] sm:$0xff]
        %v488 = vld [vmem:[%s407 + $0xc2] sm:$0xff]
        %v489 = vld [vmem:[%s407 + $0xca] sm:$0xff]
        %v490 = vld [vmem:[%s407 + $0xda] sm:$0xff]
        %v491 = vld [vmem:[%s407 + $0xe2] sm:$0xff]
        %v492 = vld [vmem:[%s407 + $0xf2] sm:$0xff]
        %v493 = vld [vmem:[%s407 + $0xfa] sm:$0xff]
        %v494 = vld [vmem:[%s407 + $0x10a] sm:$0xff]
        %v495 = vld [vmem:[%s407 + $0x112] sm:$0xff]
        %v496 = vld [vmem:[%s407 + $0x122] sm:$0xff]
        %v497 = vld [vmem:[%s407 + $0x12a] sm:$0xff]
        %v498 = vld [vmem:[%s407 + $0x13a] sm:$0xff]
        %v499 = vld [vmem:[%s407 + $0x142] sm:$0xff]
        %v500 = vld [vmem:[%s407 + $0x152] sm:$0xff]
        %v501 = vld [vmem:[%s407 + $0x15a] sm:$0xff]
        %v502 = vld [vmem:[%s407 + $0x16a] sm:$0xff]
        %v503 = vld [vmem:[%s407 + $0x172] sm:$0xff]
        %536 = vrot.lane.b32.xlu0 %v246, 4
        %v537 = vpop.permute.xlu0 %536
        %538 = vrot.lane.b32.xlu0 %v247, 4
        %v539 = vpop.permute.xlu0 %538
        %540 = vrot.lane.b32.xlu0 %v248, 4
        %v541 = vpop.permute.xlu0 %540
        %542 = vrot.lane.b32.xlu0 %v249, 4
        %v543 = vpop.permute.xlu0 %542
        %544 = vrot.lane.b32.xlu0 %v250, 4
        %v545 = vpop.permute.xlu0 %544
        %546 = vrot.lane.b32.xlu0 %v251, 4
        %v547 = vpop.permute.xlu0 %546
        %548 = vrot.lane.b32.xlu0 %v252, 4
        %v549 = vpop.permute.xlu0 %548
        %550 = vrot.lane.b32.xlu0 %v253, 4
        %v551 = vpop.permute.xlu0 %550
        %552 = vrot.lane.b32.xlu0 %v254, 4
        %v553 = vpop.permute.xlu0 %552
        %554 = vrot.lane.b32.xlu0 %v255, 4
        %v555 = vpop.permute.xlu0 %554
        %556 = vrot.lane.b32.xlu0 %v256, 4
        %v557 = vpop.permute.xlu0 %556
        %558 = vrot.lane.b32.xlu0 %v257, 4
        %v559 = vpop.permute.xlu0 %558
        %560 = vrot.lane.b32.xlu0 %v258, 4
        %v561 = vpop.permute.xlu0 %560
        %562 = vrot.lane.b32.xlu0 %v259, 4
        %v563 = vpop.permute.xlu0 %562
        %564 = vrot.lane.b32.xlu0 %v260, 4
        %v565 = vpop.permute.xlu0 %564
        %566 = vrot.lane.b32.xlu0 %v261, 4
        %v567 = vpop.permute.xlu0 %566
        %568 = vrot.lane.b32.xlu0 %v262, 4
        %v569 = vpop.permute.xlu0 %568
        %570 = vrot.lane.b32.xlu0 %v263, 4
        %v571 = vpop.permute.xlu0 %570
        %572 = vrot.lane.b32.xlu0 %v264, 4
        %v573 = vpop.permute.xlu0 %572
        %574 = vrot.lane.b32.xlu0 %v265, 4
        %v575 = vpop.permute.xlu0 %574
        %576 = vrot.lane.b32.xlu0 %v266, 4
        %v577 = vpop.permute.xlu0 %576
        %578 = vrot.lane.b32.xlu0 %v267, 4
        %v579 = vpop.permute.xlu0 %578
        %580 = vrot.lane.b32.xlu0 %v268, 4
        %v581 = vpop.permute.xlu0 %580
        %582 = vrot.lane.b32.xlu0 %v269, 4
        %v583 = vpop.permute.xlu0 %582
        %584 = vrot.lane.b32.xlu0 %v270, 4
        %v585 = vpop.permute.xlu0 %584
        %586 = vrot.lane.b32.xlu0 %v271, 4
        %v587 = vpop.permute.xlu0 %586
        %588 = vrot.lane.b32.xlu0 %v272, 4
        %v589 = vpop.permute.xlu0 %588
        %590 = vrot.lane.b32.xlu0 %v273, 4
        %v591 = vpop.permute.xlu0 %590
        %592 = vrot.lane.b32.xlu0 %v274, 4
        %v593 = vpop.permute.xlu0 %592
        %594 = vrot.lane.b32.xlu0 %v275, 4
        %v595 = vpop.permute.xlu0 %594
        %596 = vrot.lane.b32.xlu0 %v276, 4
        %v597 = vpop.permute.xlu0 %596
        %598 = vrot.lane.b32.xlu0 %v277, 4
        %v599 = vpop.permute.xlu0 %598
        %664 = vrot.lane.b32.xlu0 %v278, 8
        %v665 = vpop.permute.xlu0 %664
        %666 = vrot.lane.b32.xlu0 %v279, 8
        %v667 = vpop.permute.xlu0 %666
        %668 = vrot.lane.b32.xlu0 %v280, 8
        %v669 = vpop.permute.xlu0 %668
        %670 = vrot.lane.b32.xlu0 %v281, 8
        %v671 = vpop.permute.xlu0 %670
        %672 = vrot.lane.b32.xlu0 %v282, 8
        %v673 = vpop.permute.xlu0 %672
        %674 = vrot.lane.b32.xlu0 %v283, 8
        %v675 = vpop.permute.xlu0 %674
        %676 = vrot.lane.b32.xlu0 %v284, 8
        %v677 = vpop.permute.xlu0 %676
        %678 = vrot.lane.b32.xlu0 %v285, 8
        %v679 = vpop.permute.xlu0 %678
        %680 = vrot.lane.b32.xlu0 %v286, 8
        %v681 = vpop.permute.xlu0 %680
        %682 = vrot.lane.b32.xlu0 %v287, 8
        %v683 = vpop.permute.xlu0 %682
        %684 = vrot.lane.b32.xlu0 %v288, 8
        %v685 = vpop.permute.xlu0 %684
        %686 = vrot.lane.b32.xlu0 %v289, 8
        %v687 = vpop.permute.xlu0 %686
        %688 = vrot.lane.b32.xlu0 %v290, 8
        %v689 = vpop.permute.xlu0 %688
        %690 = vrot.lane.b32.xlu0 %v291, 8
        %v691 = vpop.permute.xlu0 %690
        %692 = vrot.lane.b32.xlu0 %v292, 8
        %v693 = vpop.permute.xlu0 %692
        %694 = vrot.lane.b32.xlu0 %v293, 8
        %v695 = vpop.permute.xlu0 %694
        %696 = vrot.lane.b32.xlu0 %v294, 8
        %v697 = vpop.permute.xlu0 %696
        %698 = vrot.lane.b32.xlu0 %v295, 8
        %v699 = vpop.permute.xlu0 %698
        %700 = vrot.lane.b32.xlu0 %v296, 8
        %v701 = vpop.permute.xlu0 %700
        %702 = vrot.lane.b32.xlu0 %v297, 8
        %v703 = vpop.permute.xlu0 %702
        %704 = vrot.lane.b32.xlu0 %v298, 8
        %v705 = vpop.permute.xlu0 %704
        %706 = vrot.lane.b32.xlu0 %v299, 8
        %v707 = vpop.permute.xlu0 %706
        %708 = vrot.lane.b32.xlu0 %v300, 8
        %v709 = vpop.permute.xlu0 %708
        %710 = vrot.lane.b32.xlu0 %v301, 8
        %v711 = vpop.permute.xlu0 %710
        %712 = vrot.lane.b32.xlu0 %v302, 8
        %v713 = vpop.permute.xlu0 %712
        %714 = vrot.lane.b32.xlu0 %v303, 8
        %v715 = vpop.permute.xlu0 %714
        %716 = vrot.lane.b32.xlu0 %v304, 8
        %v717 = vpop.permute.xlu0 %716
        %718 = vrot.lane.b32.xlu0 %v305, 8
        %v719 = vpop.permute.xlu0 %718
        %720 = vrot.lane.b32.xlu0 %v306, 8
        %v721 = vpop.permute.xlu0 %720
        %722 = vrot.lane.b32.xlu0 %v307, 8
        %v723 = vpop.permute.xlu0 %722
        %724 = vrot.lane.b32.xlu0 %v308, 8
        %v725 = vpop.permute.xlu0 %724
        %726 = vrot.lane.b32.xlu0 %v309, 8
        %v727 = vpop.permute.xlu0 %726
        %792 = vrot.lane.b32.xlu0 %v311, 12
        %v793 = vpop.permute.xlu0 %792
        %794 = vrot.lane.b32.xlu0 %v312, 12
        %v795 = vpop.permute.xlu0 %794
        %796 = vrot.lane.b32.xlu0 %v313, 12
        %v797 = vpop.permute.xlu0 %796
        %798 = vrot.lane.b32.xlu0 %v314, 12
        %v799 = vpop.permute.xlu0 %798
        %800 = vrot.lane.b32.xlu0 %v315, 12
        %v801 = vpop.permute.xlu0 %800
        %802 = vrot.lane.b32.xlu0 %v316, 12
        %v803 = vpop.permute.xlu0 %802
        %804 = vrot.lane.b32.xlu0 %v317, 12
        %v805 = vpop.permute.xlu0 %804
        %806 = vrot.lane.b32.xlu0 %v318, 12
        %v807 = vpop.permute.xlu0 %806
        %808 = vrot.lane.b32.xlu0 %v319, 12
        %v809 = vpop.permute.xlu0 %808
        %810 = vrot.lane.b32.xlu0 %v320, 12
        %v811 = vpop.permute.xlu0 %810
        %812 = vrot.lane.b32.xlu0 %v321, 12
        %v813 = vpop.permute.xlu0 %812
        %814 = vrot.lane.b32.xlu0 %v322, 12
        %v815 = vpop.permute.xlu0 %814
        %816 = vrot.lane.b32.xlu0 %v323, 12
        %v817 = vpop.permute.xlu0 %816
        %818 = vrot.lane.b32.xlu0 %v324, 12
        %v819 = vpop.permute.xlu0 %818
        %820 = vrot.lane.b32.xlu0 %v325, 12
        %v821 = vpop.permute.xlu0 %820
        %822 = vrot.lane.b32.xlu0 %v326, 12
        %v823 = vpop.permute.xlu0 %822
        %824 = vrot.lane.b32.xlu0 %v327, 12
        %v825 = vpop.permute.xlu0 %824
        %826 = vrot.lane.b32.xlu0 %v328, 12
        %v827 = vpop.permute.xlu0 %826
        %828 = vrot.lane.b32.xlu0 %v329, 12
        %v829 = vpop.permute.xlu0 %828
        %830 = vrot.lane.b32.xlu0 %v330, 12
        %v831 = vpop.permute.xlu0 %830
        %832 = vrot.lane.b32.xlu0 %v331, 12
        %v833 = vpop.permute.xlu0 %832
        %834 = vrot.lane.b32.xlu0 %v332, 12
        %v835 = vpop.permute.xlu0 %834
        %836 = vrot.lane.b32.xlu0 %v333, 12
        %v837 = vpop.permute.xlu0 %836
        %838 = vrot.lane.b32.xlu0 %v334, 12
        %v839 = vpop.permute.xlu0 %838
        %840 = vrot.lane.b32.xlu0 %v335, 12
        %v841 = vpop.permute.xlu0 %840
        %842 = vrot.lane.b32.xlu0 %v336, 12
        %v843 = vpop.permute.xlu0 %842
        %844 = vrot.lane.b32.xlu0 %v337, 12
        %v845 = vpop.permute.xlu0 %844
        %846 = vrot.lane.b32.xlu0 %v338, 12
        %v847 = vpop.permute.xlu0 %846
        %848 = vrot.lane.b32.xlu0 %v339, 12
        %v849 = vpop.permute.xlu0 %848
        %850 = vrot.lane.b32.xlu0 %v340, 12
        %v851 = vpop.permute.xlu0 %850
        %852 = vrot.lane.b32.xlu0 %v341, 12
        %v853 = vpop.permute.xlu0 %852
        %854 = vrot.lane.b32.xlu0 %v342, 12
        %v855 = vpop.permute.xlu0 %854
        %920 = vrot.lane.b32.xlu0 %v343, 16
        %v921 = vpop.permute.xlu0 %920
        %922 = vrot.lane.b32.xlu0 %v344, 16
        %v923 = vpop.permute.xlu0 %922
        %924 = vrot.lane.b32.xlu0 %v345, 16
        %v925 = vpop.permute.xlu0 %924
        %926 = vrot.lane.b32.xlu0 %v346, 16
        %v927 = vpop.permute.xlu0 %926
        %928 = vrot.lane.b32.xlu0 %v347, 16
        %v929 = vpop.permute.xlu0 %928
        %930 = vrot.lane.b32.xlu0 %v348, 16
        %v931 = vpop.permute.xlu0 %930
        %932 = vrot.lane.b32.xlu0 %v349, 16
        %v933 = vpop.permute.xlu0 %932
        %934 = vrot.lane.b32.xlu0 %v350, 16
        %v935 = vpop.permute.xlu0 %934
        %936 = vrot.lane.b32.xlu0 %v351, 16
        %v937 = vpop.permute.xlu0 %936
        %938 = vrot.lane.b32.xlu0 %v352, 16
        %v939 = vpop.permute.xlu0 %938
        %940 = vrot.lane.b32.xlu0 %v353, 16
        %v941 = vpop.permute.xlu0 %940
        %942 = vrot.lane.b32.xlu0 %v354, 16
        %v943 = vpop.permute.xlu0 %942
        %944 = vrot.lane.b32.xlu0 %v355, 16
        %v945 = vpop.permute.xlu0 %944
        %946 = vrot.lane.b32.xlu0 %v356, 16
        %v947 = vpop.permute.xlu0 %946
        %948 = vrot.lane.b32.xlu0 %v357, 16
        %v949 = vpop.permute.xlu0 %948
        %950 = vrot.lane.b32.xlu0 %v358, 16
        %v951 = vpop.permute.xlu0 %950
        %952 = vrot.lane.b32.xlu0 %v359, 16
        %v953 = vpop.permute.xlu0 %952
        %954 = vrot.lane.b32.xlu0 %v360, 16
        %v955 = vpop.permute.xlu0 %954
        %956 = vrot.lane.b32.xlu0 %v361, 16
        %v957 = vpop.permute.xlu0 %956
        %958 = vrot.lane.b32.xlu0 %v362, 16
        %v959 = vpop.permute.xlu0 %958
        %960 = vrot.lane.b32.xlu0 %v363, 16
        %v961 = vpop.permute.xlu0 %960
        %962 = vrot.lane.b32.xlu0 %v364, 16
        %v963 = vpop.permute.xlu0 %962
        %964 = vrot.lane.b32.xlu0 %v365, 16
        %v965 = vpop.permute.xlu0 %964
        %966 = vrot.lane.b32.xlu0 %v366, 16
        %v967 = vpop.permute.xlu0 %966
        %968 = vrot.lane.b32.xlu0 %v367, 16
        %v969 = vpop.permute.xlu0 %968
        %970 = vrot.lane.b32.xlu0 %v368, 16
        %v971 = vpop.permute.xlu0 %970
        %972 = vrot.lane.b32.xlu0 %v369, 16
        %v973 = vpop.permute.xlu0 %972
        %974 = vrot.lane.b32.xlu0 %v370, 16
        %v975 = vpop.permute.xlu0 %974
        %976 = vrot.lane.b32.xlu0 %v371, 16
        %v977 = vpop.permute.xlu0 %976
        %978 = vrot.lane.b32.xlu0 %v372, 16
        %v979 = vpop.permute.xlu0 %978
        %980 = vrot.lane.b32.xlu0 %v373, 16
        %v981 = vpop.permute.xlu0 %980
        %982 = vrot.lane.b32.xlu0 %v374, 16
        %v983 = vpop.permute.xlu0 %982
        %1048 = vrot.lane.b32.xlu0 %v375, 20
        %v1049 = vpop.permute.xlu0 %1048
        %1050 = vrot.lane.b32.xlu0 %v376, 20
        %v1051 = vpop.permute.xlu0 %1050
        %1052 = vrot.lane.b32.xlu0 %v377, 20
        %v1053 = vpop.permute.xlu0 %1052
        %1054 = vrot.lane.b32.xlu0 %v378, 20
        %v1055 = vpop.permute.xlu0 %1054
        %1056 = vrot.lane.b32.xlu0 %v379, 20
        %v1057 = vpop.permute.xlu0 %1056
        %1058 = vrot.lane.b32.xlu0 %v380, 20
        %v1059 = vpop.permute.xlu0 %1058
        %1060 = vrot.lane.b32.xlu0 %v381, 20
        %v1061 = vpop.permute.xlu0 %1060
        %1062 = vrot.lane.b32.xlu0 %v382, 20
        %v1063 = vpop.permute.xlu0 %1062
        %1064 = vrot.lane.b32.xlu0 %v383, 20
        %v1065 = vpop.permute.xlu0 %1064
        %1066 = vrot.lane.b32.xlu0 %v384, 20
        %v1067 = vpop.permute.xlu0 %1066
        %1068 = vrot.lane.b32.xlu0 %v385, 20
        %v1069 = vpop.permute.xlu0 %1068
        %1070 = vrot.lane.b32.xlu0 %v386, 20
        %v1071 = vpop.permute.xlu0 %1070
        %1072 = vrot.lane.b32.xlu0 %v387, 20
        %v1073 = vpop.permute.xlu0 %1072
        %1074 = vrot.lane.b32.xlu0 %v388, 20
        %v1075 = vpop.permute.xlu0 %1074
        %1076 = vrot.lane.b32.xlu0 %v389, 20
        %v1077 = vpop.permute.xlu0 %1076
        %1078 = vrot.lane.b32.xlu0 %v390, 20
        %v1079 = vpop.permute.xlu0 %1078
        %1080 = vrot.lane.b32.xlu0 %v391, 20
        %v1081 = vpop.permute.xlu0 %1080
        %1082 = vrot.lane.b32.xlu0 %v392, 20
        %v1083 = vpop.permute.xlu0 %1082
        %1084 = vrot.lane.b32.xlu0 %v393, 20
        %v1085 = vpop.permute.xlu0 %1084
        %1086 = vrot.lane.b32.xlu0 %v394, 20
        %v1087 = vpop.permute.xlu0 %1086
        %1088 = vrot.lane.b32.xlu0 %v395, 20
        %v1089 = vpop.permute.xlu0 %1088
        %1090 = vrot.lane.b32.xlu0 %v396, 20
        %v1091 = vpop.permute.xlu0 %1090
        %1092 = vrot.lane.b32.xlu0 %v397, 20
        %v1093 = vpop.permute.xlu0 %1092
        %1094 = vrot.lane.b32.xlu0 %v398, 20
        %v1095 = vpop.permute.xlu0 %1094
        %1096 = vrot.lane.b32.xlu0 %v399, 20
        %v1097 = vpop.permute.xlu0 %1096
        %1098 = vrot.lane.b32.xlu0 %v400, 20
        %v1099 = vpop.permute.xlu0 %1098
        %1100 = vrot.lane.b32.xlu0 %v401, 20
        %v1101 = vpop.permute.xlu0 %1100
        %1102 = vrot.lane.b32.xlu0 %v402, 20
        %v1103 = vpop.permute.xlu0 %1102
        %1104 = vrot.lane.b32.xlu0 %v403, 20
        %v1105 = vpop.permute.xlu0 %1104
        %1106 = vrot.lane.b32.xlu0 %v404, 20
        %v1107 = vpop.permute.xlu0 %1106
        %1108 = vrot.lane.b32.xlu0 %v405, 20
        %v1109 = vpop.permute.xlu0 %1108
        %1110 = vrot.lane.b32.xlu0 %v406, 20
        %v1111 = vpop.permute.xlu0 %1110
        %1176 = vrot.lane.b32.xlu0 %v408, 24
        %v1177 = vpop.permute.xlu0 %1176
        %1178 = vrot.lane.b32.xlu0 %v409, 24
        %v1179 = vpop.permute.xlu0 %1178
        %1180 = vrot.lane.b32.xlu0 %v410, 24
        %v1181 = vpop.permute.xlu0 %1180
        %1182 = vrot.lane.b32.xlu0 %v411, 24
        %v1183 = vpop.permute.xlu0 %1182
        %1184 = vrot.lane.b32.xlu0 %v412, 24
        %v1185 = vpop.permute.xlu0 %1184
        %1186 = vrot.lane.b32.xlu0 %v413, 24
        %v1187 = vpop.permute.xlu0 %1186
        %1188 = vrot.lane.b32.xlu0 %v414, 24
        %v1189 = vpop.permute.xlu0 %1188
        %1190 = vrot.lane.b32.xlu0 %v415, 24
        %v1191 = vpop.permute.xlu0 %1190
        %1192 = vrot.lane.b32.xlu0 %v416, 24
        %v1193 = vpop.permute.xlu0 %1192
        %1194 = vrot.lane.b32.xlu0 %v417, 24
        %v1195 = vpop.permute.xlu0 %1194
        %1196 = vrot.lane.b32.xlu0 %v418, 24
        %v1197 = vpop.permute.xlu0 %1196
        %1198 = vrot.lane.b32.xlu0 %v419, 24
        %v1199 = vpop.permute.xlu0 %1198
        %1200 = vrot.lane.b32.xlu0 %v420, 24
        %v1201 = vpop.permute.xlu0 %1200
        %1202 = vrot.lane.b32.xlu0 %v421, 24
        %v1203 = vpop.permute.xlu0 %1202
        %1204 = vrot.lane.b32.xlu0 %v422, 24
        %v1205 = vpop.permute.xlu0 %1204
        %1206 = vrot.lane.b32.xlu0 %v423, 24
        %v1207 = vpop.permute.xlu0 %1206
        %1208 = vrot.lane.b32.xlu0 %v424, 24
        %v1209 = vpop.permute.xlu0 %1208
        %1210 = vrot.lane.b32.xlu0 %v425, 24
        %v1211 = vpop.permute.xlu0 %1210
        %1212 = vrot.lane.b32.xlu0 %v426, 24
        %v1213 = vpop.permute.xlu0 %1212
        %1214 = vrot.lane.b32.xlu0 %v427, 24
        %v1215 = vpop.permute.xlu0 %1214
        %1216 = vrot.lane.b32.xlu0 %v428, 24
        %v1217 = vpop.permute.xlu0 %1216
        %1218 = vrot.lane.b32.xlu0 %v429, 24
        %v1219 = vpop.permute.xlu0 %1218
        %1220 = vrot.lane.b32.xlu0 %v430, 24
        %v1221 = vpop.permute.xlu0 %1220
        %1222 = vrot.lane.b32.xlu0 %v431, 24
        %v1223 = vpop.permute.xlu0 %1222
        %1224 = vrot.lane.b32.xlu0 %v432, 24
        %v1225 = vpop.permute.xlu0 %1224
        %1226 = vrot.lane.b32.xlu0 %v433, 24
        %v1227 = vpop.permute.xlu0 %1226
        %1228 = vrot.lane.b32.xlu0 %v434, 24
        %v1229 = vpop.permute.xlu0 %1228
        %1230 = vrot.lane.b32.xlu0 %v435, 24
        %v1231 = vpop.permute.xlu0 %1230
        %1232 = vrot.lane.b32.xlu0 %v436, 24
        %v1233 = vpop.permute.xlu0 %1232
        %1234 = vrot.lane.b32.xlu0 %v437, 24
        %v1235 = vpop.permute.xlu0 %1234
        %1236 = vrot.lane.b32.xlu0 %v438, 24
        %v1237 = vpop.permute.xlu0 %1236
        %1238 = vrot.lane.b32.xlu0 %v439, 24
        %v1239 = vpop.permute.xlu0 %1238
        %1304 = vrot.lane.b32.xlu0 %v440, 28
        %v1305 = vpop.permute.xlu0 %1304
        %1306 = vrot.lane.b32.xlu0 %v441, 28
        %v1307 = vpop.permute.xlu0 %1306
        %1308 = vrot.lane.b32.xlu0 %v442, 28
        %v1309 = vpop.permute.xlu0 %1308
        %1310 = vrot.lane.b32.xlu0 %v443, 28
        %v1311 = vpop.permute.xlu0 %1310
        %1312 = vrot.lane.b32.xlu0 %v444, 28
        %v1313 = vpop.permute.xlu0 %1312
        %1314 = vrot.lane.b32.xlu0 %v445, 28
        %v1315 = vpop.permute.xlu0 %1314
        %1316 = vrot.lane.b32.xlu0 %v446, 28
        %v1317 = vpop.permute.xlu0 %1316
        %1318 = vrot.lane.b32.xlu0 %v447, 28
        %v1319 = vpop.permute.xlu0 %1318
        %1320 = vrot.lane.b32.xlu0 %v448, 28
        %v1321 = vpop.permute.xlu0 %1320
        %1322 = vrot.lane.b32.xlu0 %v449, 28
        %v1323 = vpop.permute.xlu0 %1322
        %1324 = vrot.lane.b32.xlu0 %v450, 28
        %v1325 = vpop.permute.xlu0 %1324
        %1326 = vrot.lane.b32.xlu0 %v451, 28
        %v1327 = vpop.permute.xlu0 %1326
        %1328 = vrot.lane.b32.xlu0 %v452, 28
        %v1329 = vpop.permute.xlu0 %1328
        %1330 = vrot.lane.b32.xlu0 %v453, 28
        %v1331 = vpop.permute.xlu0 %1330
        %1332 = vrot.lane.b32.xlu0 %v454, 28
        %v1333 = vpop.permute.xlu0 %1332
        %1334 = vrot.lane.b32.xlu0 %v455, 28
        %v1335 = vpop.permute.xlu0 %1334
        %1336 = vrot.lane.b32.xlu0 %v456, 28
        %v1337 = vpop.permute.xlu0 %1336
        %1338 = vrot.lane.b32.xlu0 %v457, 28
        %v1339 = vpop.permute.xlu0 %1338
        %1340 = vrot.lane.b32.xlu0 %v458, 28
        %v1341 = vpop.permute.xlu0 %1340
        %1342 = vrot.lane.b32.xlu0 %v459, 28
        %v1343 = vpop.permute.xlu0 %1342
        %1344 = vrot.lane.b32.xlu0 %v460, 28
        %v1345 = vpop.permute.xlu0 %1344
        %1346 = vrot.lane.b32.xlu0 %v461, 28
        %v1347 = vpop.permute.xlu0 %1346
        %1348 = vrot.lane.b32.xlu0 %v462, 28
        %v1349 = vpop.permute.xlu0 %1348
        %1350 = vrot.lane.b32.xlu0 %v463, 28
        %v1351 = vpop.permute.xlu0 %1350
        %1352 = vrot.lane.b32.xlu0 %v464, 28
        %v1353 = vpop.permute.xlu0 %1352
        %1354 = vrot.lane.b32.xlu0 %v465, 28
        %v1355 = vpop.permute.xlu0 %1354
        %1356 = vrot.lane.b32.xlu0 %v466, 28
        %v1357 = vpop.permute.xlu0 %1356
        %1358 = vrot.lane.b32.xlu0 %v467, 28
        %v1359 = vpop.permute.xlu0 %1358
        %1360 = vrot.lane.b32.xlu0 %v468, 28
        %v1361 = vpop.permute.xlu0 %1360
        %1362 = vrot.lane.b32.xlu0 %v469, 28
        %v1363 = vpop.permute.xlu0 %1362
        %1364 = vrot.lane.b32.xlu0 %v470, 28
        %v1365 = vpop.permute.xlu0 %1364
        %1366 = vrot.lane.b32.xlu0 %v471, 28
        %v1367 = vpop.permute.xlu0 %1366
        %1432 = vrot.lane.b32.xlu0 %v472, 32
        %v1433 = vpop.permute.xlu0 %1432
        %1434 = vrot.lane.b32.xlu0 %v473, 32
        %v1435 = vpop.permute.xlu0 %1434
        %1436 = vrot.lane.b32.xlu0 %v474, 32
        %v1437 = vpop.permute.xlu0 %1436
        %1438 = vrot.lane.b32.xlu0 %v475, 32
        %v1439 = vpop.permute.xlu0 %1438
        %1440 = vrot.lane.b32.xlu0 %v476, 32
        %v1441 = vpop.permute.xlu0 %1440
        %1442 = vrot.lane.b32.xlu0 %v477, 32
        %v1443 = vpop.permute.xlu0 %1442
        %1444 = vrot.lane.b32.xlu0 %v478, 32
        %v1445 = vpop.permute.xlu0 %1444
        %1446 = vrot.lane.b32.xlu0 %v479, 32
        %v1447 = vpop.permute.xlu0 %1446
        %1448 = vrot.lane.b32.xlu0 %v480, 32
        %v1449 = vpop.permute.xlu0 %1448
        %1450 = vrot.lane.b32.xlu0 %v481, 32
        %v1451 = vpop.permute.xlu0 %1450
        %1452 = vrot.lane.b32.xlu0 %v482, 32
        %v1453 = vpop.permute.xlu0 %1452
        %1454 = vrot.lane.b32.xlu0 %v483, 32
        %v1455 = vpop.permute.xlu0 %1454
        %1456 = vrot.lane.b32.xlu0 %v484, 32
        %v1457 = vpop.permute.xlu0 %1456
        %1458 = vrot.lane.b32.xlu0 %v485, 32
        %v1459 = vpop.permute.xlu0 %1458
        %1460 = vrot.lane.b32.xlu0 %v486, 32
        %v1461 = vpop.permute.xlu0 %1460
        %1462 = vrot.lane.b32.xlu0 %v487, 32
        %v1463 = vpop.permute.xlu0 %1462
        %1464 = vrot.lane.b32.xlu0 %v488, 32
        %v1465 = vpop.permute.xlu0 %1464
        %1466 = vrot.lane.b32.xlu0 %v489, 32
        %v1467 = vpop.permute.xlu0 %1466
        %1468 = vrot.lane.b32.xlu0 %v490, 32
        %v1469 = vpop.permute.xlu0 %1468
        %1470 = vrot.lane.b32.xlu0 %v491, 32
        %v1471 = vpop.permute.xlu0 %1470
        %1472 = vrot.lane.b32.xlu0 %v492, 32
        %v1473 = vpop.permute.xlu0 %1472
        %1474 = vrot.lane.b32.xlu0 %v493, 32
        %v1475 = vpop.permute.xlu0 %1474
        %1476 = vrot.lane.b32.xlu0 %v494, 32
        %v1477 = vpop.permute.xlu0 %1476
        %1478 = vrot.lane.b32.xlu0 %v495, 32
        %v1479 = vpop.permute.xlu0 %1478
        %1480 = vrot.lane.b32.xlu0 %v496, 32
        %v1481 = vpop.permute.xlu0 %1480
        %1482 = vrot.lane.b32.xlu0 %v497, 32
        %v1483 = vpop.permute.xlu0 %1482
        %1484 = vrot.lane.b32.xlu0 %v498, 32
        %v1485 = vpop.permute.xlu0 %1484
        %1486 = vrot.lane.b32.xlu0 %v499, 32
        %v1487 = vpop.permute.xlu0 %1486
        %1488 = vrot.lane.b32.xlu0 %v500, 32
        %v1489 = vpop.permute.xlu0 %1488
        %1490 = vrot.lane.b32.xlu0 %v501, 32
        %v1491 = vpop.permute.xlu0 %1490
        %1492 = vrot.lane.b32.xlu0 %v502, 32
        %v1493 = vpop.permute.xlu0 %1492
        %1494 = vrot.lane.b32.xlu0 %v503, 32
        %v1495 = vpop.permute.xlu0 %1494
        %vm1528 = vcmask 31744
        %v1529 = vsel %vm1528, %v214, %v537
        %v1530 = vsel %vm1528, %v215, %v539
        %v1531 = vsel %vm1528, %v216, %v541
        %v1532 = vsel %vm1528, %v217, %v543
        %v1533 = vsel %vm1528, %v218, %v545
        %v1534 = vsel %vm1528, %v219, %v547
        %v1535 = vsel %vm1528, %v220, %v549
        %v1536 = vsel %vm1528, %v221, %v551
        %v1537 = vsel %vm1528, %v222, %v553
        %v1538 = vsel %vm1528, %v223, %v555
        %v1539 = vsel %vm1528, %v224, %v557
        %v1540 = vsel %vm1528, %v225, %v559
        %v1541 = vsel %vm1528, %v226, %v561
        %v1542 = vsel %vm1528, %v227, %v563
        %v1543 = vsel %vm1528, %v228, %v565
        %v1544 = vsel %vm1528, %v229, %v567
        %v1545 = vsel %vm1528, %v230, %v569
        %v1546 = vsel %vm1528, %v231, %v571
        %v1547 = vsel %vm1528, %v232, %v573
        %v1548 = vsel %vm1528, %v233, %v575
        %v1549 = vsel %vm1528, %v234, %v577
        %v1550 = vsel %vm1528, %v235, %v579
        %v1551 = vsel %vm1528, %v236, %v581
        %v1552 = vsel %vm1528, %v237, %v583
        %v1553 = vsel %vm1528, %v238, %v585
        %v1554 = vsel %vm1528, %v239, %v587
        %v1555 = vsel %vm1528, %v240, %v589
        %v1556 = vsel %vm1528, %v241, %v591
        %v1557 = vsel %vm1528, %v242, %v593
        %v1558 = vsel %vm1528, %v243, %v595
        %v1559 = vsel %vm1528, %v244, %v597
        %v1560 = vsel %vm1528, %v245, %v599
        %vm1561 = vcmask 64512
        %v1562 = vsel %vm1561, %v1529, %v665
        %v1563 = vsel %vm1561, %v1530, %v667
        %v1564 = vsel %vm1561, %v1531, %v669
        %v1565 = vsel %vm1561, %v1532, %v671
        %v1566 = vsel %vm1561, %v1533, %v673
        %v1567 = vsel %vm1561, %v1534, %v675
        %v1568 = vsel %vm1561, %v1535, %v677
        %v1569 = vsel %vm1561, %v1536, %v679
        %v1570 = vsel %vm1561, %v1537, %v681
        %v1571 = vsel %vm1561, %v1538, %v683
        %v1572 = vsel %vm1561, %v1539, %v685
        %v1573 = vsel %vm1561, %v1540, %v687
        %v1574 = vsel %vm1561, %v1541, %v689
        %v1575 = vsel %vm1561, %v1542, %v691
        %v1576 = vsel %vm1561, %v1543, %v693
        %v1577 = vsel %vm1561, %v1544, %v695
        %v1578 = vsel %vm1561, %v1545, %v697
        %v1579 = vsel %vm1561, %v1546, %v699
        %v1580 = vsel %vm1561, %v1547, %v701
        %v1581 = vsel %vm1561, %v1548, %v703
        %v1582 = vsel %vm1561, %v1549, %v705
        %v1583 = vsel %vm1561, %v1550, %v707
        %v1584 = vsel %vm1561, %v1551, %v709
        %v1585 = vsel %vm1561, %v1552, %v711
        %v1586 = vsel %vm1561, %v1553, %v713
        %v1587 = vsel %vm1561, %v1554, %v715
        %v1588 = vsel %vm1561, %v1555, %v717
        %v1589 = vsel %vm1561, %v1556, %v719
        %v1590 = vsel %vm1561, %v1557, %v721
        %v1591 = vsel %vm1561, %v1558, %v723
        %v1592 = vsel %vm1561, %v1559, %v725
        %v1593 = vsel %vm1561, %v1560, %v727
        %vm1594 = vcmask 97280
        %v1595 = vsel %vm1594, %v1562, %v793
        %v1596 = vsel %vm1594, %v1563, %v795
        %v1597 = vsel %vm1594, %v1564, %v797
        %v1598 = vsel %vm1594, %v1565, %v799
        %v1599 = vsel %vm1594, %v1566, %v801
        %v1600 = vsel %vm1594, %v1567, %v803
        %v1601 = vsel %vm1594, %v1568, %v805
        %v1602 = vsel %vm1594, %v1569, %v807
        %v1603 = vsel %vm1594, %v1570, %v809
        %v1604 = vsel %vm1594, %v1571, %v811
        %v1605 = vsel %vm1594, %v1572, %v813
        %v1606 = vsel %vm1594, %v1573, %v815
        %v1607 = vsel %vm1594, %v1574, %v817
        %v1608 = vsel %vm1594, %v1575, %v819
        %v1609 = vsel %vm1594, %v1576, %v821
        %v1610 = vsel %vm1594, %v1577, %v823
        %v1611 = vsel %vm1594, %v1578, %v825
        %v1612 = vsel %vm1594, %v1579, %v827
        %v1613 = vsel %vm1594, %v1580, %v829
        %v1614 = vsel %vm1594, %v1581, %v831
        %v1615 = vsel %vm1594, %v1582, %v833
        %v1616 = vsel %vm1594, %v1583, %v835
        %v1617 = vsel %vm1594, %v1584, %v837
        %v1618 = vsel %vm1594, %v1585, %v839
        %v1619 = vsel %vm1594, %v1586, %v841
        %v1620 = vsel %vm1594, %v1587, %v843
        %v1621 = vsel %vm1594, %v1588, %v845
        %v1622 = vsel %vm1594, %v1589, %v847
        %v1623 = vsel %vm1594, %v1590, %v849
        %v1624 = vsel %vm1594, %v1591, %v851
        %v1625 = vsel %vm1594, %v1592, %v853
        %v1626 = vsel %vm1594, %v1593, %v855
        %vm1627 = vcmask 130048
        %v1628 = vsel %vm1627, %v1595, %v921
        %v1629 = vsel %vm1627, %v1596, %v923
        %v1630 = vsel %vm1627, %v1597, %v925
        %v1631 = vsel %vm1627, %v1598, %v927
        %v1632 = vsel %vm1627, %v1599, %v929
        %v1633 = vsel %vm1627, %v1600, %v931
        %v1634 = vsel %vm1627, %v1601, %v933
        %v1635 = vsel %vm1627, %v1602, %v935
        %v1636 = vsel %vm1627, %v1603, %v937
        %v1637 = vsel %vm1627, %v1604, %v939
        %v1638 = vsel %vm1627, %v1605, %v941
        %v1639 = vsel %vm1627, %v1606, %v943
        %v1640 = vsel %vm1627, %v1607, %v945
        %v1641 = vsel %vm1627, %v1608, %v947
        %v1642 = vsel %vm1627, %v1609, %v949
        %v1643 = vsel %vm1627, %v1610, %v951
        %v1644 = vsel %vm1627, %v1611, %v953
        %v1645 = vsel %vm1627, %v1612, %v955
        %v1646 = vsel %vm1627, %v1613, %v957
        %v1647 = vsel %vm1627, %v1614, %v959
        %v1648 = vsel %vm1627, %v1615, %v961
        %v1649 = vsel %vm1627, %v1616, %v963
        %v1650 = vsel %vm1627, %v1617, %v965
        %v1651 = vsel %vm1627, %v1618, %v967
        %v1652 = vsel %vm1627, %v1619, %v969
        %v1653 = vsel %vm1627, %v1620, %v971
        %v1654 = vsel %vm1627, %v1621, %v973
        %v1655 = vsel %vm1627, %v1622, %v975
        %v1656 = vsel %vm1627, %v1623, %v977
        %v1657 = vsel %vm1627, %v1624, %v979
        %v1658 = vsel %vm1627, %v1625, %v981
        %v1659 = vsel %vm1627, %v1626, %v983
        %vm1660 = vcmask 162816
        %v1661 = vsel %vm1660, %v1628, %v1049
        %v1662 = vsel %vm1660, %v1629, %v1051
        %v1663 = vsel %vm1660, %v1630, %v1053
        %v1664 = vsel %vm1660, %v1631, %v1055
        %v1665 = vsel %vm1660, %v1632, %v1057
        %v1666 = vsel %vm1660, %v1633, %v1059
        %v1667 = vsel %vm1660, %v1634, %v1061
        %v1668 = vsel %vm1660, %v1635, %v1063
        %v1669 = vsel %vm1660, %v1636, %v1065
        %v1670 = vsel %vm1660, %v1637, %v1067
        %v1671 = vsel %vm1660, %v1638, %v1069
        %v1672 = vsel %vm1660, %v1639, %v1071
        %v1673 = vsel %vm1660, %v1640, %v1073
        %v1674 = vsel %vm1660, %v1641, %v1075
        %v1675 = vsel %vm1660, %v1642, %v1077
        %v1676 = vsel %vm1660, %v1643, %v1079
        %v1677 = vsel %vm1660, %v1644, %v1081
        %v1678 = vsel %vm1660, %v1645, %v1083
        %v1679 = vsel %vm1660, %v1646, %v1085
        %v1680 = vsel %vm1660, %v1647, %v1087
        %v1681 = vsel %vm1660, %v1648, %v1089
        %v1682 = vsel %vm1660, %v1649, %v1091
        %v1683 = vsel %vm1660, %v1650, %v1093
        %v1684 = vsel %vm1660, %v1651, %v1095
        %v1685 = vsel %vm1660, %v1652, %v1097
        %v1686 = vsel %vm1660, %v1653, %v1099
        %v1687 = vsel %vm1660, %v1654, %v1101
        %v1688 = vsel %vm1660, %v1655, %v1103
        %v1689 = vsel %vm1660, %v1656, %v1105
        %v1690 = vsel %vm1660, %v1657, %v1107
        %v1691 = vsel %vm1660, %v1658, %v1109
        %v1692 = vsel %vm1660, %v1659, %v1111
        %vm1693 = vcmask 195584
        %v1694 = vsel %vm1693, %v1661, %v1177
        %v1695 = vsel %vm1693, %v1662, %v1179
        %v1696 = vsel %vm1693, %v1663, %v1181
        %v1697 = vsel %vm1693, %v1664, %v1183
        %v1698 = vsel %vm1693, %v1665, %v1185
        %v1699 = vsel %vm1693, %v1666, %v1187
        %v1700 = vsel %vm1693, %v1667, %v1189
        %v1701 = vsel %vm1693, %v1668, %v1191
        %v1702 = vsel %vm1693, %v1669, %v1193
        %v1703 = vsel %vm1693, %v1670, %v1195
        %v1704 = vsel %vm1693, %v1671, %v1197
        %v1705 = vsel %vm1693, %v1672, %v1199
        %v1706 = vsel %vm1693, %v1673, %v1201
        %v1707 = vsel %vm1693, %v1674, %v1203
        %v1708 = vsel %vm1693, %v1675, %v1205
        %v1709 = vsel %vm1693, %v1676, %v1207
        %v1710 = vsel %vm1693, %v1677, %v1209
        %v1711 = vsel %vm1693, %v1678, %v1211
        %v1712 = vsel %vm1693, %v1679, %v1213
        %v1713 = vsel %vm1693, %v1680, %v1215
        %v1714 = vsel %vm1693, %v1681, %v1217
        %v1715 = vsel %vm1693, %v1682, %v1219
        %v1716 = vsel %vm1693, %v1683, %v1221
        %v1717 = vsel %vm1693, %v1684, %v1223
        %v1718 = vsel %vm1693, %v1685, %v1225
        %v1719 = vsel %vm1693, %v1686, %v1227
        %v1720 = vsel %vm1693, %v1687, %v1229
        %v1721 = vsel %vm1693, %v1688, %v1231
        %v1722 = vsel %vm1693, %v1689, %v1233
        %v1723 = vsel %vm1693, %v1690, %v1235
        %v1724 = vsel %vm1693, %v1691, %v1237
        %v1725 = vsel %vm1693, %v1692, %v1239
        %vm1726 = vcmask 228352
        %v1727 = vsel %vm1726, %v1694, %v1305
        %v1728 = vsel %vm1726, %v1695, %v1307
        %v1729 = vsel %vm1726, %v1696, %v1309
        %v1730 = vsel %vm1726, %v1697, %v1311
        %v1731 = vsel %vm1726, %v1698, %v1313
        %v1732 = vsel %vm1726, %v1699, %v1315
        %v1733 = vsel %vm1726, %v1700, %v1317
        %v1734 = vsel %vm1726, %v1701, %v1319
        %v1735 = vsel %vm1726, %v1702, %v1321
        %v1736 = vsel %vm1726, %v1703, %v1323
        %v1737 = vsel %vm1726, %v1704, %v1325
        %v1738 = vsel %vm1726, %v1705, %v1327
        %v1739 = vsel %vm1726, %v1706, %v1329
        %v1740 = vsel %vm1726, %v1707, %v1331
        %v1741 = vsel %vm1726, %v1708, %v1333
        %v1742 = vsel %vm1726, %v1709, %v1335
        %v1743 = vsel %vm1726, %v1710, %v1337
        %v1744 = vsel %vm1726, %v1711, %v1339
        %v1745 = vsel %vm1726, %v1712, %v1341
        %v1746 = vsel %vm1726, %v1713, %v1343
        %v1747 = vsel %vm1726, %v1714, %v1345
        %v1748 = vsel %vm1726, %v1715, %v1347
        %v1749 = vsel %vm1726, %v1716, %v1349
        %v1750 = vsel %vm1726, %v1717, %v1351
        %v1751 = vsel %vm1726, %v1718, %v1353
        %v1752 = vsel %vm1726, %v1719, %v1355
        %v1753 = vsel %vm1726, %v1720, %v1357
        %v1754 = vsel %vm1726, %v1721, %v1359
        %v1755 = vsel %vm1726, %v1722, %v1361
        %v1756 = vsel %vm1726, %v1723, %v1363
        %v1757 = vsel %vm1726, %v1724, %v1365
        %v1758 = vsel %vm1726, %v1725, %v1367
        %vm1759 = vcmask 261120
        %v1760 = vsel %vm1759, %v1727, %v1433
        %v1761 = vsel %vm1759, %v1728, %v1435
        %v1762 = vsel %vm1759, %v1729, %v1437
        %v1763 = vsel %vm1759, %v1730, %v1439
        %v1764 = vsel %vm1759, %v1731, %v1441
        %v1765 = vsel %vm1759, %v1732, %v1443
        %v1766 = vsel %vm1759, %v1733, %v1445
        %v1767 = vsel %vm1759, %v1734, %v1447
        %v1768 = vsel %vm1759, %v1735, %v1449
        %v1769 = vsel %vm1759, %v1736, %v1451
        %v1770 = vsel %vm1759, %v1737, %v1453
        %v1771 = vsel %vm1759, %v1738, %v1455
        %v1772 = vsel %vm1759, %v1739, %v1457
        %v1773 = vsel %vm1759, %v1740, %v1459
        %v1774 = vsel %vm1759, %v1741, %v1461
        %v1775 = vsel %vm1759, %v1742, %v1463
        %v1776 = vsel %vm1759, %v1743, %v1465
        %v1777 = vsel %vm1759, %v1744, %v1467
        %v1778 = vsel %vm1759, %v1745, %v1469
        %v1779 = vsel %vm1759, %v1746, %v1471
        %v1780 = vsel %vm1759, %v1747, %v1473
        %v1781 = vsel %vm1759, %v1748, %v1475
        %v1782 = vsel %vm1759, %v1749, %v1477
        %v1783 = vsel %vm1759, %v1750, %v1479
        %v1784 = vsel %vm1759, %v1751, %v1481
        %v1785 = vsel %vm1759, %v1752, %v1483
        %v1786 = vsel %vm1759, %v1753, %v1485
        %v1787 = vsel %vm1759, %v1754, %v1487
        %v1788 = vsel %vm1759, %v1755, %v1489
        %v1789 = vsel %vm1759, %v1756, %v1491
        %v1790 = vsel %vm1759, %v1757, %v1493
        %v1791 = vsel %vm1759, %v1758, %v1495
        %v1792 = vld [vmem:[%s210] sm:$0xff]
        %v1793 = vld [vmem:[%s210 + $0x8] sm:$0xff]
        %v1794 = vld [vmem:[%s210 + $0x10] sm:$0xff]
        %v1795 = vld [vmem:[%s210 + $0x18] sm:$0xff]
        %v1796 = vld [vmem:[%s210 + $0x20] sm:$0xf]
        %v1797 = vld [vmem:[%s213] sm:$0x1]
        %v1799 = vperm.slane %v1797, 0
        %vm1801 = vcmask 293888
        %v1803 = vsel %vm1801, %v1760, 0
        %v1806 = vsel %vm1801, %v1761, 0
        %v1809 = vsel %vm1801, %v1762, 0
        %v1812 = vsel %vm1801, %v1763, 0
        %v1815 = vsel %vm1801, %v1764, 0
        %v1818 = vsel %vm1801, %v1765, 0
        %v1821 = vsel %vm1801, %v1766, 0
        %v1824 = vsel %vm1801, %v1767, 0
        %v1827 = vsel %vm1801, %v1768, 0
        %v1830 = vsel %vm1801, %v1769, 0
        %v1833 = vsel %vm1801, %v1770, 0
        %v1836 = vsel %vm1801, %v1771, 0
        %v1839 = vsel %vm1801, %v1772, 0
        %v1842 = vsel %vm1801, %v1773, 0
        %v1845 = vsel %vm1801, %v1774, 0
        %v1848 = vsel %vm1801, %v1775, 0
        %v1851 = vsel %vm1801, %v1776, 0
        %v1854 = vsel %vm1801, %v1777, 0
        %v1857 = vsel %vm1801, %v1778, 0
        %v1860 = vsel %vm1801, %v1779, 0
        %v1863 = vsel %vm1801, %v1780, 0
        %v1866 = vsel %vm1801, %v1781, 0
        %v1869 = vsel %vm1801, %v1782, 0
        %v1872 = vsel %vm1801, %v1783, 0
        %v1875 = vsel %vm1801, %v1784, 0
        %v1878 = vsel %vm1801, %v1785, 0
        %v1881 = vsel %vm1801, %v1786, 0
        %v1884 = vsel %vm1801, %v1787, 0
        %v1887 = vsel %vm1801, %v1788, 0
        %v1890 = vsel %vm1801, %v1789, 0
        %v1893 = vsel %vm1801, %v1790, 0
        %v1896 = vsel %vm1801, %v1791, 0
        %vm1898 = vcmask 1043456
        %v1900 = vsel %vm1898, %v1796, 0
        %1902 = vmatpush.msra.mxu0 0.0
        %1903 = vmatpush.msra.mxu0 0.0
        %1904 = vmatpush.msra.mxu0 0.0
        %1905 = vmatpush.msra.mxu0 0.0
        %1906 = vmatpush.msra.mxu0 0.0
        %1907 = vmatpush.msra.mxu0 0.0
        %1908 = vmatpush.msra.mxu0 0.0
        %1909 = vmatpush.msra.mxu0 0.0
        %1910 = vmatpush.msra.mxu0 0.0
        %1911 = vmatpush.msra.mxu0 0.0
        %1912 = vmatpush.msra.mxu0 0.0
        %1913 = vmatpush.msra.mxu0 %v1900
        %1914 = vmatpush.msra.mxu0 %v1795
        %1915 = vmatpush.msra.mxu0 %v1794
        %1916 = vmatpush.msra.mxu0 %v1793
        %1917 = vmatpush.msra.mxu0 %v1792
        %1918 = vmatmul.f32.gmra.mxu0 %v1803
        %v1919 = vpop.f32.mrf.mxu0
        %v1920 = vadd.f32 %v1799, %v1919
        %1921 = vmatmul.f32.gmra.mxu0 %v1806
        %v1922 = vpop.f32.mrf.mxu0
        %v1923 = vadd.f32 %v1799, %v1922
        %1924 = vmatmul.f32.gmra.mxu0 %v1809
        %v1925 = vpop.f32.mrf.mxu0
        %v1926 = vadd.f32 %v1799, %v1925
        %1927 = vmatmul.f32.gmra.mxu0 %v1812
        %v1928 = vpop.f32.mrf.mxu0
        %v1929 = vadd.f32 %v1799, %v1928
        %1930 = vmatmul.f32.gmra.mxu0 %v1815
        %v1931 = vpop.f32.mrf.mxu0
        %v1932 = vadd.f32 %v1799, %v1931
        %1933 = vmatmul.f32.gmra.mxu0 %v1818
        %v1934 = vpop.f32.mrf.mxu0
        %v1935 = vadd.f32 %v1799, %v1934
        %1936 = vmatmul.f32.gmra.mxu0 %v1821
        %v1937 = vpop.f32.mrf.mxu0
        %v1938 = vadd.f32 %v1799, %v1937
        %1939 = vmatmul.f32.gmra.mxu0 %v1824
        %v1940 = vpop.f32.mrf.mxu0
        %v1941 = vadd.f32 %v1799, %v1940
        %1942 = vmatmul.f32.gmra.mxu0 %v1827
        %v1943 = vpop.f32.mrf.mxu0
        %v1944 = vadd.f32 %v1799, %v1943
        %1945 = vmatmul.f32.gmra.mxu0 %v1830
        %v1946 = vpop.f32.mrf.mxu0
        %v1947 = vadd.f32 %v1799, %v1946
        %1948 = vmatmul.f32.gmra.mxu0 %v1833
        %v1949 = vpop.f32.mrf.mxu0
        %v1950 = vadd.f32 %v1799, %v1949
        %1951 = vmatmul.f32.gmra.mxu0 %v1836
        %v1952 = vpop.f32.mrf.mxu0
        %v1953 = vadd.f32 %v1799, %v1952
        %1954 = vmatmul.f32.gmra.mxu0 %v1839
        %v1955 = vpop.f32.mrf.mxu0
        %v1956 = vadd.f32 %v1799, %v1955
        %1957 = vmatmul.f32.gmra.mxu0 %v1842
        %v1958 = vpop.f32.mrf.mxu0
        %v1959 = vadd.f32 %v1799, %v1958
        %1960 = vmatmul.f32.gmra.mxu0 %v1845
        %v1961 = vpop.f32.mrf.mxu0
        %v1962 = vadd.f32 %v1799, %v1961
        %1963 = vmatmul.f32.gmra.mxu0 %v1848
        %v1964 = vpop.f32.mrf.mxu0
        %v1965 = vadd.f32 %v1799, %v1964
        %1966 = vmatmul.f32.gmra.mxu0 %v1851
        %v1967 = vpop.f32.mrf.mxu0
        %v1968 = vadd.f32 %v1799, %v1967
        %1969 = vmatmul.f32.gmra.mxu0 %v1854
        %v1970 = vpop.f32.mrf.mxu0
        %v1971 = vadd.f32 %v1799, %v1970
        %1972 = vmatmul.f32.gmra.mxu0 %v1857
        %v1973 = vpop.f32.mrf.mxu0
        %v1974 = vadd.f32 %v1799, %v1973
        %1975 = vmatmul.f32.gmra.mxu0 %v1860
        %v1976 = vpop.f32.mrf.mxu0
        %v1977 = vadd.f32 %v1799, %v1976
        %1978 = vmatmul.f32.gmra.mxu0 %v1863
        %v1979 = vpop.f32.mrf.mxu0
        %v1980 = vadd.f32 %v1799, %v1979
        %1981 = vmatmul.f32.gmra.mxu0 %v1866
        %v1982 = vpop.f32.mrf.mxu0
        %v1983 = vadd.f32 %v1799, %v1982
        %1984 = vmatmul.f32.gmra.mxu0 %v1869
        %v1985 = vpop.f32.mrf.mxu0
        %v1986 = vadd.f32 %v1799, %v1985
        %1987 = vmatmul.f32.gmra.mxu0 %v1872
        %v1988 = vpop.f32.mrf.mxu0
        %v1989 = vadd.f32 %v1799, %v1988
        %1990 = vmatmul.f32.gmra.mxu0 %v1875
        %v1991 = vpop.f32.mrf.mxu0
        %v1992 = vadd.f32 %v1799, %v1991
        %1993 = vmatmul.f32.gmra.mxu0 %v1878
        %v1994 = vpop.f32.mrf.mxu0
        %v1995 = vadd.f32 %v1799, %v1994
        %1996 = vmatmul.f32.gmra.mxu0 %v1881
        %v1997 = vpop.f32.mrf.mxu0
        %v1998 = vadd.f32 %v1799, %v1997
        %1999 = vmatmul.f32.gmra.mxu0 %v1884
        %v2000 = vpop.f32.mrf.mxu0
        %v2001 = vadd.f32 %v1799, %v2000
        %2002 = vmatmul.f32.gmra.mxu0 %v1887
        %v2003 = vpop.f32.mrf.mxu0
        %v2004 = vadd.f32 %v1799, %v2003
        %2005 = vmatmul.f32.gmra.mxu0 %v1890
        %v2006 = vpop.f32.mrf.mxu0
        %v2007 = vadd.f32 %v1799, %v2006
        %2008 = vmatmul.f32.gmra.mxu0 %v1893
        %v2009 = vpop.f32.mrf.mxu0
        %v2010 = vadd.f32 %v1799, %v2009
        %2011 = vmatmul.f32.gmra.mxu0 %v1896
        %v2012 = vpop.f32.mrf.mxu0
        %v2013 = vadd.f32 %v1799, %v2012
        %2014 = vdwg.mxu0
        %2015 = vst [vmem:[%s201] sm:$0xff] %v1920
        %2016 = vst [vmem:[%s201 + $0x8] sm:$0xff] %v1923
        %2017 = vst [vmem:[%s201 + $0x10] sm:$0xff] %v1926
        %2018 = vst [vmem:[%s201 + $0x18] sm:$0xff] %v1929
        %2019 = vst [vmem:[%s201 + $0x20] sm:$0xff] %v1932
        %2020 = vst [vmem:[%s201 + $0x28] sm:$0xff] %v1935
        %2021 = vst [vmem:[%s201 + $0x30] sm:$0xff] %v1938
        %2022 = vst [vmem:[%s201 + $0x38] sm:$0xff] %v1941
        %2023 = vst [vmem:[%s201 + $0x40] sm:$0xff] %v1944
        %2024 = vst [vmem:[%s201 + $0x48] sm:$0xff] %v1947
        %2025 = vst [vmem:[%s201 + $0x50] sm:$0xff] %v1950
        %2026 = vst [vmem:[%s201 + $0x58] sm:$0xff] %v1953
        %2027 = vst [vmem:[%s201 + $0x60] sm:$0xff] %v1956
        %2028 = vst [vmem:[%s201 + $0x68] sm:$0xff] %v1959
        %2029 = vst [vmem:[%s201 + $0x70] sm:$0xff] %v1962
        %2030 = vst [vmem:[%s201 + $0x78] sm:$0xff] %v1965
        %2031 = vst [vmem:[%s201 + $0x80] sm:$0xff] %v1968
        %2032 = vst [vmem:[%s201 + $0x88] sm:$0xff] %v1971
        %2033 = vst [vmem:[%s201 + $0x90] sm:$0xff] %v1974
        %2034 = vst [vmem:[%s201 + $0x98] sm:$0xff] %v1977
        %2035 = vst [vmem:[%s201 + $0xa0] sm:$0xff] %v1980
        %2036 = vst [vmem:[%s201 + $0xa8] sm:$0xff] %v1983
        %2037 = vst [vmem:[%s201 + $0xb0] sm:$0xff] %v1986
        %2038 = vst [vmem:[%s201 + $0xb8] sm:$0xff] %v1989
        %2039 = vst [vmem:[%s201 + $0xc0] sm:$0xff] %v1992
        %2040 = vst [vmem:[%s201 + $0xc8] sm:$0xff] %v1995
        %2041 = vst [vmem:[%s201 + $0xd0] sm:$0xff] %v1998
        %2042 = vst [vmem:[%s201 + $0xd8] sm:$0xff] %v2001
        %2043 = vst [vmem:[%s201 + $0xe0] sm:$0xff] %v2004
        %2044 = vst [vmem:[%s201 + $0xe8] sm:$0xff] %v2007
        %2045 = vst [vmem:[%s201 + $0xf0] sm:$0xff] %v2010
        %2046 = vst [vmem:[%s201 + $0xf8] sm:$0xff] %v2013
        %s2047 = sand.u32 %s117, 1
        %s2048 = scalar_lea.sflag [#allocation3], %s2047
        %s2049 = sand.u32 %s117, 1
        %s2050 = smul.addr %s2049, 256
        %s2051 = scalar_lea.vmem [#allocation2], %s2050
        // Predicated region
        $region33: #{tpu_custom_call.1} parent=31 // pred_check
          %p2052 = pneg %p127
        $region34: #{tpu_custom_call.1} parent=31 // pred_check_branch
          %2054 = sbr.rel (%p2052) target = $region36
        $region35: #{tpu_custom_call.1} parent=31 // pred_region
          %2056 = vsyncadd %s2048, 0
          %s2057 = smul.addr %s21, 32
          %s2058 = sadd.s32 %s22, %s2057
          %s2059 = smul.addr %s2058, 8
          %s2060 = scalar_lea.hbm %s3, %s2059
          %s2061 = sshll.u32 %s2051, 4
          %s2062 = int_to_ptr.vmem [resolvable:$true] %s2061
          %s2063 = sshll.u32 %s2060, 4
          %s2064 = int_to_ptr.hbm [resolvable:$true] %s2063
          %2069 = dma.vmem_to_hbm [thread:$0]  %s2062, 4096, %s2064, %s2048, 128, 128, 8
        $region36: #{tpu_custom_call.1} parent=31 // pred_fallthru
          _
      $region32: #{tpu_custom_call.1} parent=5 // pred_fallthru
        _
      %p2070 = scmp.le.s32.totalorder 2, %s12
      // Predicated region
      $region37: #{tpu_custom_call.1} parent=5 // pred_check
        %p2071 = pneg %p2070
      $region38: #{tpu_custom_call.1} parent=5 // pred_check_branch
        %2073 = sbr.rel (%p2071) target = $region40
      $region39: #{tpu_custom_call.1} parent=5 // pred_region
        %s2074 = ssub.s32 %s12, 2
        // Predicated region
        $region41: #{tpu_custom_call.1} parent=39 // pred_check
          %p2075 = pneg %p133
        $region42: #{tpu_custom_call.1} parent=39 // pred_check_branch
          %2077 = sbr.rel (%p2075) target = $region44
        $region43: #{tpu_custom_call.1} parent=39 // pred_region
          %s2078 = sand.u32 %s118, 1
          %s2079 = scalar_lea.sflag [#allocation3], %s2078
          %s2080 = sand.u32 %s118, 1
          %s2081 = smul.addr %s2080, 256
          %s2082 = scalar_lea.vmem [#allocation2], %s2081
          %2084 = dma.done %s2079, 4096
        $region44: #{tpu_custom_call.1} parent=39 // pred_fallthru
          _
      $region40: #{tpu_custom_call.1} parent=5 // pred_fallthru
        _
    $region6: #{tpu_custom_call.1} parent=1 // loop_footer
      %s16 = sadd.s32 1, %s12
    $region7: #{tpu_custom_call.1} parent=1 // loop_footer_branch
      %11 = sbr.rel target = $region3
    $region8: #{tpu_custom_call.1} parent=1 // loop_exit
      _
    %2085 = vsyncpa [#allocation3], 1
    %s2086 = scalar_lea.sflag [#allocation3], 1
    %2087 = vsyncpa %s2086, 1

</llo_original>
